<compile_context>
chip_gen: v7x
topology: tpu7x:2x2x1
jax: 0.10.0
libtpu: 0.0.40
codegen_flags: <defaults>
</compile_context>

<pallas_src>
import jax
import jax.numpy as jnp
from jax import lax
from jax.experimental import pallas as pl
from jax.experimental.pallas import tpu as pltpu


def _decoder_kernel(x_ref, h0_ref, c0_ref,
                    wih_ref, whh_ref, b_ref,
                    wp_ref, bp_ref,
                    out_ref, hT_ref, cT_ref,
                    gx_sc, h_sc):
    """Full teacher-forcing decoder forward in one kernel invocation.

    x_ref:  (T*B, E)  time-major flattened embeddings (row = t*B + b)
    out:    (B, T, V) log-probs (batch-first; no wrapper transpose needed)
    gx_sc:  (T*B, 4H) VMEM scratch — precomputed input gate pre-activations
    h_sc:   (T*B, H)  VMEM scratch — all hidden states, time-major rows
    """
    B, T, V = out_ref.shape
    H = h0_ref.shape[-1]

    # ---- Phase 1: batched input projection (hoisted out of the recurrence).
    #      One (T*B, E) x (E, 4H) MXU matmul instead of T tiny ones.
    gx_sc[...] = (jnp.dot(x_ref[...], wih_ref[...],
                          preferred_element_type=jnp.float32)
                  + b_ref[...])

    # ---- Phase 2: serial LSTM recurrence. Only h @ W_hh is on the critical path.
    def step(t, carry):
        h, c = carry
        row = pl.multiple_of(t * B, B)
        gates = gx_sc[pl.ds(row, B), :] + jnp.dot(
            h, whh_ref[...], preferred_element_type=jnp.float32)
        # PyTorch LSTM gate order: [i, f, g, o]
        i_g = jax.nn.sigmoid(gates[:, 0:H])
        f_g = jax.nn.sigmoid(gates[:, H:2 * H])
        g_g = jnp.tanh(gates[:, 2 * H:3 * H])
        o_g = jax.nn.sigmoid(gates[:, 3 * H:4 * H])
        c_new = f_g * c + i_g * g_g
        h_new = o_g * jnp.tanh(c_new)
        h_sc[pl.ds(row, B), :] = h_new
        return (h_new, c_new)

    hT, cT = lax.fori_loop(
        0, T, step,
        (h0_ref[...].astype(jnp.float32), c0_ref[...].astype(jnp.float32)),
        unroll=True)
    hT_ref[...] = hT.astype(hT_ref.dtype)
    cT_ref[...] = cT.astype(cT_ref.dtype)

    # ---- Phase 3: batched vocab projection + log_softmax, emitted batch-first.
    #      B is small & static, so a static per-batch-row loop keeps the output
    #      stores lane-dense (T, V) tiles without any in-kernel transpose.
    for b in range(B):
        h_b = h_sc[pl.ds(b, T, stride=B), :]                # rows t*B + b -> (T, H)
        logits = (jnp.dot(h_b, wp_ref[...],
                          preferred_element_type=jnp.float32)
                  + bp_ref[...])                             # (T, V)
        m = jnp.max(logits, axis=-1, keepdims=True)
        lse = jnp.log(jnp.sum(jnp.exp(logits - m), axis=-1, keepdims=True)) + m
        out_ref[b] = (logits - lse).astype(out_ref.dtype)    # (T, V)


def decoder_rnn_teach_force(token_ids, h0, c0, params):
    """Teacher-forcing forward of DecoderRNN.

    token_ids: (B, T) int32
    h0, c0:    (1, B, H) float32  (n_layers=1)
    returns:   log_probs (B, T, V), (hT, cT) each (1, B, H)
    """
    emb = params["embedding"]          # (V_in, E)
    w_ih = params["w_ih"]              # (E, 4H)
    w_hh = params["w_hh"]              # (H, 4H)
    b = params["b"]                    # (1, 4H)  (= b_ih + b_hh)
    w_p = params["w_proj"]             # (H, V)
    b_p = params["b_proj"]             # (1, V)

    B, T = token_ids.shape
    H = w_hh.shape[0]
    V = w_p.shape[1]

    # Embedding lookup + (identity, p=0) input dropout: glue in plain JAX.
    # Gather directly into time-major flat row order (row = t*B + b), so only the
    # tiny (B, T) int ids are transposed — never the big activation tensors.
    flat_ids = jnp.transpose(token_ids, (1, 0)).reshape(-1)   # (T*B,)
    x_flat = jnp.take(emb, flat_ids, axis=0)                  # (T*B, E)

    out_shapes = (
        jax.ShapeDtypeStruct((B, T, V), jnp.float32),   # log-probs, batch-first
        jax.ShapeDtypeStruct((B, H), jnp.float32),      # final h
        jax.ShapeDtypeStruct((B, H), jnp.float32),      # final c
    )

    log_probs, hT, cT = pl.pallas_call(
        _decoder_kernel,
        out_shape=out_shapes,
        scratch_shapes=[
            pltpu.VMEM((T * B, 4 * H), jnp.float32),    # gates_x (input projection)
            pltpu.VMEM((T * B, H), jnp.float32),        # all hidden states
        ],
    )(x_flat, h0[0], c0[0], w_ih, w_hh, b, w_p, b_p)

    return log_probs, (hT[None], cT[None])


def _reference_forward(token_ids, h0, c0, params):
    """Pure-JAX reference (same math) for correctness checking."""
    emb = params["embedding"]
    w_ih, w_hh, b = params["w_ih"], params["w_hh"], params["b"]
    w_p, b_p = params["w_proj"], params["b_proj"]
    H = w_hh.shape[0]

    x = jnp.take(emb, token_ids, axis=0)              # (B, T, E)

    def step(carry, xt):
        h, c = carry
        gates = xt @ w_ih + h @ w_hh + b
        i = jax.nn.sigmoid(gates[:, 0:H])
        f = jax.nn.sigmoid(gates[:, H:2 * H])
        g = jnp.tanh(gates[:, 2 * H:3 * H])
        o = jax.nn.sigmoid(gates[:, 3 * H:4 * H])
        c = f * c + i * g
        h = o * jnp.tanh(c)
        return (h, c), h

    (hT, cT), hs = jax.lax.scan(step, (h0[0], c0[0]), jnp.transpose(x, (1, 0, 2)))
    hs = jnp.transpose(hs, (1, 0, 2))                 # (B, T, H)
    logits = hs @ w_p + b_p
    return jax.nn.log_softmax(logits, axis=-1), (hT[None], cT[None])


def make_params(key, vocab_size, input_size, hidden_size, output_size):
    """Deterministic parameter init (mirrors module __init__ shapes)."""
    ks = jax.random.split(key, 6)
    s = 0.1
    emb = s * jax.random.normal(ks[0], (vocab_size, input_size), jnp.float32)
    w_ih = s * jax.random.normal(ks[1], (input_size, 4 * hidden_size), jnp.float32)
    w_hh = s * jax.random.normal(ks[2], (hidden_size, 4 * hidden_size), jnp.float32)
    b_ih = s * jax.random.normal(ks[3], (4 * hidden_size,), jnp.float32)
    b_hh = jnp.zeros((4 * hidden_size,), jnp.float32)
    # BaseRNN fills the LSTM forget-gate bias slices with 1.0 for every bias tensor.
    b_ih = b_ih.at[hidden_size:2 * hidden_size].set(1.0)
    b_hh = b_hh.at[hidden_size:2 * hidden_size].set(1.0)
    w_p = s * jax.random.normal(ks[4], (hidden_size, output_size), jnp.float32)
    b_p = s * jax.random.normal(ks[5], (output_size,), jnp.float32)
    return {
        "embedding": emb,
        "w_ih": w_ih,
        "w_hh": w_hh,
        "b": (b_ih + b_hh)[None, :],
        "w_proj": w_p,
        "b_proj": b_p[None, :],
    }


if __name__ == "__main__":
    # Small shapes consistent with the module: batch=2, seq(max_len)=8,
    # input(embedding)=32, hidden=32, vocab=output_size=128, n_layers=1 LSTM.
    B, T, E, H, V = 2, 8, 32, 32, 128

    key = jax.random.PRNGKey(0)
    k_tok, k_h, k_c, k_par = jax.random.split(key, 4)

    params = make_params(k_par, vocab_size=V, input_size=E,
                         hidden_size=H, output_size=V)

    token_ids = jax.random.randint(k_tok, (B, T), 0, V, dtype=jnp.int32)
    h0 = jax.random.normal(k_h, (1, B, H), jnp.float32)
    c0 = jax.random.normal(k_c, (1, B, H), jnp.float32)

    log_probs, (hT, cT) = decoder_rnn_teach_force(token_ids, h0, c0, params)
    jax.block_until_ready(log_probs)
    jax.block_until_ready(hT)
    jax.block_until_ready(cT)

    # Correctness check vs pure-JAX reference.
    ref_lp, (ref_h, ref_c) = _reference_forward(token_ids, h0, c0, params)
    assert log_probs.shape == (B, T, V)
    assert hT.shape == (1, B, H) and cT.shape == (1, B, H)
    assert jnp.allclose(log_probs, ref_lp, atol=1e-4, rtol=1e-4)
    assert jnp.allclose(hT, ref_h, atol=1e-4, rtol=1e-4)
    assert jnp.allclose(cT, ref_c, atol=1e-4, rtol=1e-4)

    print("KERNEL_OK")
</pallas_src>

<mosaic_0001>
module attributes {stable_mosaic.version = 11 : i64} {
  func.func @_decoder_kernel(%arg0: memref<16x32xf32, #tpu.memory_space<vmem>>, %arg1: memref<2x32xf32, #tpu.memory_space<vmem>>, %arg2: memref<2x32xf32, #tpu.memory_space<vmem>>, %arg3: memref<32x128xf32, #tpu.memory_space<vmem>>, %arg4: memref<32x128xf32, #tpu.memory_space<vmem>>, %arg5: memref<1x128xf32, #tpu.memory_space<vmem>>, %arg6: memref<32x128xf32, #tpu.memory_space<vmem>>, %arg7: memref<1x128xf32, #tpu.memory_space<vmem>>, %arg8: memref<2x8x128xf32, #tpu.memory_space<vmem>>, %arg9: memref<2x32xf32, #tpu.memory_space<vmem>>, %arg10: memref<2x32xf32, #tpu.memory_space<vmem>>, %arg11: memref<16x128xf32, #tpu.memory_space<vmem>>, %arg12: memref<16x32xf32, #tpu.memory_space<vmem>>) attributes {dimension_semantics = [], scalar_prefetch = 0 : i64, scratch_operands = 2 : i64, tpu.core_type = #tpu.core_type<tc>} {
    %c0 = arith.constant 0 : index
    %c0_0 = arith.constant 0 : index
    %0 = vector.load %arg0[%c0, %c0_0] : memref<16x32xf32, #tpu.memory_space<vmem>>, vector<16x32xf32>
    %c0_1 = arith.constant 0 : index
    %c0_2 = arith.constant 0 : index
    %1 = vector.load %arg3[%c0_1, %c0_2] : memref<32x128xf32, #tpu.memory_space<vmem>>, vector<32x128xf32>
    %cst = arith.constant dense<0.000000e+00> : vector<16x128xf32>
    %2 = tpu.matmul %0, %1, %cst {dimension_numbers = #tpu.dot_dimension_numbers<[1], [0], [0], [1], [0, 0, 1, 1], [], []>} : vector<16x32xf32>, vector<32x128xf32>, vector<16x128xf32> -> vector<16x128xf32>
    %c0_3 = arith.constant 0 : index
    %c0_4 = arith.constant 0 : index
    %3 = vector.load %arg5[%c0_3, %c0_4] : memref<1x128xf32, #tpu.memory_space<vmem>>, vector<1x128xf32>
    %4 = vector.broadcast %3 : vector<1x128xf32> to vector<16x128xf32>
    %5 = arith.addf %2, %4 : vector<16x128xf32>
    %c0_5 = arith.constant 0 : index
    %c0_6 = arith.constant 0 : index
    %6 = vector.load %arg11[%c0_5, %c0_6] : memref<16x128xf32, #tpu.memory_space<vmem>>, vector<16x128xf32>
    tpu.vector_store %arg11[%c0_5, %c0_6], %5 {strides = array<i32>} : memref<16x128xf32, #tpu.memory_space<vmem>>, vector<16x128xf32>,
    %c0_7 = arith.constant 0 : index
    %c0_8 = arith.constant 0 : index
    %7 = vector.load %arg1[%c0_7, %c0_8] : memref<2x32xf32, #tpu.memory_space<vmem>>, vector<2x32xf32>
    %c0_9 = arith.constant 0 : index
    %c0_10 = arith.constant 0 : index
    %8 = vector.load %arg2[%c0_9, %c0_10] : memref<2x32xf32, #tpu.memory_space<vmem>>, vector<2x32xf32>
    %c0_i32 = arith.constant 0 : i32
    %c2_i32 = arith.constant 2 : i32
    %9 = arith.muli %c0_i32, %c2_i32 : i32
    %10 = tpu.assume_multiple %9, 2 : i32
    %11 = arith.index_cast %10 : i32 to index
    %c0_11 = arith.constant 0 : index
    %12 = vector.load %arg11[%11, %c0_11] : memref<16x128xf32, #tpu.memory_space<vmem>>, vector<2x128xf32>
    %c0_12 = arith.constant 0 : index
    %c0_13 = arith.constant 0 : index
    %13 = vector.load %arg4[%c0_12, %c0_13] : memref<32x128xf32, #tpu.memory_space<vmem>>, vector<32x128xf32>
    %cst_14 = arith.constant dense<0.000000e+00> : vector<2x128xf32>
    %14 = tpu.matmul %7, %13, %cst_14 {dimension_numbers = #tpu.dot_dimension_numbers<[1], [0], [0], [1], [0, 0, 1, 1], [], []>} : vector<2x32xf32>, vector<32x128xf32>, vector<2x128xf32> -> vector<2x128xf32>
    %15 = arith.addf %12, %14 : vector<2x128xf32>
    %16 = vector.extract_strided_slice %15 {offsets = [0, 0], sizes = [2, 32], strides = [1, 1]} : vector<2x128xf32> to vector<2x32xf32>
    %17 = arith.negf %16 : vector<2x32xf32>
    %18 = math.exp %17 : vector<2x32xf32>
    %cst_15 = arith.constant 1.000000e+00 : f32
    %19 = vector.broadcast %cst_15 : f32 to vector<2x32xf32>
    %20 = arith.addf %19, %18 : vector<2x32xf32>
    %21 = arith.divf %19, %20 : vector<2x32xf32>
    %22 = vector.extract_strided_slice %15 {offsets = [0, 32], sizes = [2, 32], strides = [1, 1]} : vector<2x128xf32> to vector<2x32xf32>
    %23 = arith.negf %22 : vector<2x32xf32>
    %24 = math.exp %23 : vector<2x32xf32>
    %cst_16 = arith.constant 1.000000e+00 : f32
    %25 = vector.broadcast %cst_16 : f32 to vector<2x32xf32>
    %26 = arith.addf %25, %24 : vector<2x32xf32>
    %27 = arith.divf %25, %26 : vector<2x32xf32>
    %28 = vector.extract_strided_slice %15 {offsets = [0, 64], sizes = [2, 32], strides = [1, 1]} : vector<2x128xf32> to vector<2x32xf32>
    %29 = math.tanh %28 : vector<2x32xf32>
    %30 = vector.extract_strided_slice %15 {offsets = [0, 96], sizes = [2, 32], strides = [1, 1]} : vector<2x128xf32> to vector<2x32xf32>
    %31 = arith.negf %30 : vector<2x32xf32>
    %32 = math.exp %31 : vector<2x32xf32>
    %cst_17 = arith.constant 1.000000e+00 : f32
    %33 = vector.broadcast %cst_17 : f32 to vector<2x32xf32>
    %34 = arith.addf %33, %32 : vector<2x32xf32>
    %35 = arith.divf %33, %34 : vector<2x32xf32>
    %36 = arith.mulf %27, %8 : vector<2x32xf32>
    %37 = arith.mulf %21, %29 : vector<2x32xf32>
    %38 = arith.addf %36, %37 : vector<2x32xf32>
    %39 = math.tanh %38 : vector<2x32xf32>
    %40 = arith.mulf %35, %39 : vector<2x32xf32>
    %41 = arith.index_cast %10 : i32 to index
    %c0_18 = arith.constant 0 : index
    %42 = vector.load %arg12[%41, %c0_18] : memref<16x32xf32, #tpu.memory_space<vmem>>, vector<2x32xf32>
    tpu.vector_store %arg12[%41, %c0_18], %40 {strides = array<i32>} : memref<16x32xf32, #tpu.memory_space<vmem>>, vector<2x32xf32>,
    %c1_i32 = arith.constant 1 : i32
    %c2_i32_19 = arith.constant 2 : i32
    %43 = arith.muli %c1_i32, %c2_i32_19 : i32
    %44 = tpu.assume_multiple %43, 2 : i32
    %45 = arith.index_cast %44 : i32 to index
    %c0_20 = arith.constant 0 : index
    %46 = vector.load %arg11[%45, %c0_20] : memref<16x128xf32, #tpu.memory_space<vmem>>, vector<2x128xf32>
    %c0_21 = arith.constant 0 : index
    %c0_22 = arith.constant 0 : index
    %47 = vector.load %arg4[%c0_21, %c0_22] : memref<32x128xf32, #tpu.memory_space<vmem>>, vector<32x128xf32>
    %cst_23 = arith.constant dense<0.000000e+00> : vector<2x128xf32>
    %48 = tpu.matmul %40, %47, %cst_23 {dimension_numbers = #tpu.dot_dimension_numbers<[1], [0], [0], [1], [0, 0, 1, 1], [], []>} : vector<2x32xf32>, vector<32x128xf32>, vector<2x128xf32> -> vector<2x128xf32>
    %49 = arith.addf %46, %48 : vector<2x128xf32>
    %50 = vector.extract_strided_slice %49 {offsets = [0, 0], sizes = [2, 32], strides = [1, 1]} : vector<2x128xf32> to vector<2x32xf32>
    %51 = arith.negf %50 : vector<2x32xf32>
    %52 = math.exp %51 : vector<2x32xf32>
    %cst_24 = arith.constant 1.000000e+00 : f32
    %53 = vector.broadcast %cst_24 : f32 to vector<2x32xf32>
    %54 = arith.addf %53, %52 : vector<2x32xf32>
    %55 = arith.divf %53, %54 : vector<2x32xf32>
    %56 = vector.extract_strided_slice %49 {offsets = [0, 32], sizes = [2, 32], strides = [1, 1]} : vector<2x128xf32> to vector<2x32xf32>
    %57 = arith.negf %56 : vector<2x32xf32>
    %58 = math.exp %57 : vector<2x32xf32>
    %cst_25 = arith.constant 1.000000e+00 : f32
    %59 = vector.broadcast %cst_25 : f32 to vector<2x32xf32>
    %60 = arith.addf %59, %58 : vector<2x32xf32>
    %61 = arith.divf %59, %60 : vector<2x32xf32>
    %62 = vector.extract_strided_slice %49 {offsets = [0, 64], sizes = [2, 32], strides = [1, 1]} : vector<2x128xf32> to vector<2x32xf32>
    %63 = math.tanh %62 : vector<2x32xf32>
    %64 = vector.extract_strided_slice %49 {offsets = [0, 96], sizes = [2, 32], strides = [1, 1]} : vector<2x128xf32> to vector<2x32xf32>
    %65 = arith.negf %64 : vector<2x32xf32>
    %66 = math.exp %65 : vector<2x32xf32>
    %cst_26 = arith.constant 1.000000e+00 : f32
    %67 = vector.broadcast %cst_26 : f32 to vector<2x32xf32>
    %68 = arith.addf %67, %66 : vector<2x32xf32>
    %69 = arith.divf %67, %68 : vector<2x32xf32>
    %70 = arith.mulf %61, %38 : vector<2x32xf32>
    %71 = arith.mulf %55, %63 : vector<2x32xf32>
    %72 = arith.addf %70, %71 : vector<2x32xf32>
    %73 = math.tanh %72 : vector<2x32xf32>
    %74 = arith.mulf %69, %73 : vector<2x32xf32>
    %75 = arith.index_cast %44 : i32 to index
    %c0_27 = arith.constant 0 : index
    %76 = vector.load %arg12[%75, %c0_27] : memref<16x32xf32, #tpu.memory_space<vmem>>, vector<2x32xf32>
    tpu.vector_store %arg12[%75, %c0_27], %74 {strides = array<i32>} : memref<16x32xf32, #tpu.memory_space<vmem>>, vector<2x32xf32>,
    %c2_i32_28 = arith.constant 2 : i32
    %c2_i32_29 = arith.constant 2 : i32
    %77 = arith.muli %c2_i32_28, %c2_i32_29 : i32
    %78 = tpu.assume_multiple %77, 2 : i32
    %79 = arith.index_cast %78 : i32 to index
    %c0_30 = arith.constant 0 : index
    %80 = vector.load %arg11[%79, %c0_30] : memref<16x128xf32, #tpu.memory_space<vmem>>, vector<2x128xf32>
    %c0_31 = arith.constant 0 : index
    %c0_32 = arith.constant 0 : index
    %81 = vector.load %arg4[%c0_31, %c0_32] : memref<32x128xf32, #tpu.memory_space<vmem>>, vector<32x128xf32>
    %cst_33 = arith.constant dense<0.000000e+00> : vector<2x128xf32>
    %82 = tpu.matmul %74, %81, %cst_33 {dimension_numbers = #tpu.dot_dimension_numbers<[1], [0], [0], [1], [0, 0, 1, 1], [], []>} : vector<2x32xf32>, vector<32x128xf32>, vector<2x128xf32> -> vector<2x128xf32>
    %83 = arith.addf %80, %82 : vector<2x128xf32>
    %84 = vector.extract_strided_slice %83 {offsets = [0, 0], sizes = [2, 32], strides = [1, 1]} : vector<2x128xf32> to vector<2x32xf32>
    %85 = arith.negf %84 : vector<2x32xf32>
    %86 = math.exp %85 : vector<2x32xf32>
    %cst_34 = arith.constant 1.000000e+00 : f32
    %87 = vector.broadcast %cst_34 : f32 to vector<2x32xf32>
    %88 = arith.addf %87, %86 : vector<2x32xf32>
    %89 = arith.divf %87, %88 : vector<2x32xf32>
    %90 = vector.extract_strided_slice %83 {offsets = [0, 32], sizes = [2, 32], strides = [1, 1]} : vector<2x128xf32> to vector<2x32xf32>
    %91 = arith.negf %90 : vector<2x32xf32>
    %92 = math.exp %91 : vector<2x32xf32>
    %cst_35 = arith.constant 1.000000e+00 : f32
    %93 = vector.broadcast %cst_35 : f32 to vector<2x32xf32>
    %94 = arith.addf %93, %92 : vector<2x32xf32>
    %95 = arith.divf %93, %94 : vector<2x32xf32>
    %96 = vector.extract_strided_slice %83 {offsets = [0, 64], sizes = [2, 32], strides = [1, 1]} : vector<2x128xf32> to vector<2x32xf32>
    %97 = math.tanh %96 : vector<2x32xf32>
    %98 = vector.extract_strided_slice %83 {offsets = [0, 96], sizes = [2, 32], strides = [1, 1]} : vector<2x128xf32> to vector<2x32xf32>
    %99 = arith.negf %98 : vector<2x32xf32>
    %100 = math.exp %99 : vector<2x32xf32>
    %cst_36 = arith.constant 1.000000e+00 : f32
    %101 = vector.broadcast %cst_36 : f32 to vector<2x32xf32>
    %102 = arith.addf %101, %100 : vector<2x32xf32>
    %103 = arith.divf %101, %102 : vector<2x32xf32>
    %104 = arith.mulf %95, %72 : vector<2x32xf32>
    %105 = arith.mulf %89, %97 : vector<2x32xf32>
    %106 = arith.addf %104, %105 : vector<2x32xf32>
    %107 = math.tanh %106 : vector<2x32xf32>
    %108 = arith.mulf %103, %107 : vector<2x32xf32>
    %109 = arith.index_cast %78 : i32 to index
    %c0_37 = arith.constant 0 : index
    %110 = vector.load %arg12[%109, %c0_37] : memref<16x32xf32, #tpu.memory_space<vmem>>, vector<2x32xf32>
    tpu.vector_store %arg12[%109, %c0_37], %108 {strides = array<i32>} : memref<16x32xf32, #tpu.memory_space<vmem>>, vector<2x32xf32>,
    %c3_i32 = arith.constant 3 : i32
    %c2_i32_38 = arith.constant 2 : i32
    %111 = arith.muli %c3_i32, %c2_i32_38 : i32
    %112 = tpu.assume_multiple %111, 2 : i32
    %113 = arith.index_cast %112 : i32 to index
    %c0_39 = arith.constant 0 : index
    %114 = vector.load %arg11[%113, %c0_39] : memref<16x128xf32, #tpu.memory_space<vmem>>, vector<2x128xf32>
    %c0_40 = arith.constant 0 : index
    %c0_41 = arith.constant 0 : index
    %115 = vector.load %arg4[%c0_40, %c0_41] : memref<32x128xf32, #tpu.memory_space<vmem>>, vector<32x128xf32>
    %cst_42 = arith.constant dense<0.000000e+00> : vector<2x128xf32>
    %116 = tpu.matmul %108, %115, %cst_42 {dimension_numbers = #tpu.dot_dimension_numbers<[1], [0], [0], [1], [0, 0, 1, 1], [], []>} : vector<2x32xf32>, vector<32x128xf32>, vector<2x128xf32> -> vector<2x128xf32>
    %117 = arith.addf %114, %116 : vector<2x128xf32>
    %118 = vector.extract_strided_slice %117 {offsets = [0, 0], sizes = [2, 32], strides = [1, 1]} : vector<2x128xf32> to vector<2x32xf32>
    %119 = arith.negf %118 : vector<2x32xf32>
    %120 = math.exp %119 : vector<2x32xf32>
    %cst_43 = arith.constant 1.000000e+00 : f32
    %121 = vector.broadcast %cst_43 : f32 to vector<2x32xf32>
    %122 = arith.addf %121, %120 : vector<2x32xf32>
    %123 = arith.divf %121, %122 : vector<2x32xf32>
    %124 = vector.extract_strided_slice %117 {offsets = [0, 32], sizes = [2, 32], strides = [1, 1]} : vector<2x128xf32> to vector<2x32xf32>
    %125 = arith.negf %124 : vector<2x32xf32>
    %126 = math.exp %125 : vector<2x32xf32>
    %cst_44 = arith.constant 1.000000e+00 : f32
    %127 = vector.broadcast %cst_44 : f32 to vector<2x32xf32>
    %128 = arith.addf %127, %126 : vector<2x32xf32>
    %129 = arith.divf %127, %128 : vector<2x32xf32>
    %130 = vector.extract_strided_slice %117 {offsets = [0, 64], sizes = [2, 32], strides = [1, 1]} : vector<2x128xf32> to vector<2x32xf32>
    %131 = math.tanh %130 : vector<2x32xf32>
    %132 = vector.extract_strided_slice %117 {offsets = [0, 96], sizes = [2, 32], strides = [1, 1]} : vector<2x128xf32> to vector<2x32xf32>
    %133 = arith.negf %132 : vector<2x32xf32>
    %134 = math.exp %133 : vector<2x32xf32>
    %cst_45 = arith.constant 1.000000e+00 : f32
    %135 = vector.broadcast %cst_45 : f32 to vector<2x32xf32>
    %136 = arith.addf %135, %134 : vector<2x32xf32>
    %137 = arith.divf %135, %136 : vector<2x32xf32>
    %138 = arith.mulf %129, %106 : vector<2x32xf32>
    %139 = arith.mulf %123, %131 : vector<2x32xf32>
    %140 = arith.addf %138, %139 : vector<2x32xf32>
    %141 = math.tanh %140 : vector<2x32xf32>
    %142 = arith.mulf %137, %141 : vector<2x32xf32>
    %143 = arith.index_cast %112 : i32 to index
    %c0_46 = arith.constant 0 : index
    %144 = vector.load %arg12[%143, %c0_46] : memref<16x32xf32, #tpu.memory_space<vmem>>, vector<2x32xf32>
    tpu.vector_store %arg12[%143, %c0_46], %142 {strides = array<i32>} : memref<16x32xf32, #tpu.memory_space<vmem>>, vector<2x32xf32>,
    %c4_i32 = arith.constant 4 : i32
    %c2_i32_47 = arith.constant 2 : i32
    %145 = arith.muli %c4_i32, %c2_i32_47 : i32
    %146 = tpu.assume_multiple %145, 2 : i32
    %147 = arith.index_cast %146 : i32 to index
    %c0_48 = arith.constant 0 : index
    %148 = vector.load %arg11[%147, %c0_48] : memref<16x128xf32, #tpu.memory_space<vmem>>, vector<2x128xf32>
    %c0_49 = arith.constant 0 : index
    %c0_50 = arith.constant 0 : index
    %149 = vector.load %arg4[%c0_49, %c0_50] : memref<32x128xf32, #tpu.memory_space<vmem>>, vector<32x128xf32>
    %cst_51 = arith.constant dense<0.000000e+00> : vector<2x128xf32>
    %150 = tpu.matmul %142, %149, %cst_51 {dimension_numbers = #tpu.dot_dimension_numbers<[1], [0], [0], [1], [0, 0, 1, 1], [], []>} : vector<2x32xf32>, vector<32x128xf32>, vector<2x128xf32> -> vector<2x128xf32>
    %151 = arith.addf %148, %150 : vector<2x128xf32>
    %152 = vector.extract_strided_slice %151 {offsets = [0, 0], sizes = [2, 32], strides = [1, 1]} : vector<2x128xf32> to vector<2x32xf32>
    %153 = arith.negf %152 : vector<2x32xf32>
    %154 = math.exp %153 : vector<2x32xf32>
    %cst_52 = arith.constant 1.000000e+00 : f32
    %155 = vector.broadcast %cst_52 : f32 to vector<2x32xf32>
    %156 = arith.addf %155, %154 : vector<2x32xf32>
    %157 = arith.divf %155, %156 : vector<2x32xf32>
    %158 = vector.extract_strided_slice %151 {offsets = [0, 32], sizes = [2, 32], strides = [1, 1]} : vector<2x128xf32> to vector<2x32xf32>
    %159 = arith.negf %158 : vector<2x32xf32>
    %160 = math.exp %159 : vector<2x32xf32>
    %cst_53 = arith.constant 1.000000e+00 : f32
    %161 = vector.broadcast %cst_53 : f32 to vector<2x32xf32>
    %162 = arith.addf %161, %160 : vector<2x32xf32>
    %163 = arith.divf %161, %162 : vector<2x32xf32>
    %164 = vector.extract_strided_slice %151 {offsets = [0, 64], sizes = [2, 32], strides = [1, 1]} : vector<2x128xf32> to vector<2x32xf32>
    %165 = math.tanh %164 : vector<2x32xf32>
    %166 = vector.extract_strided_slice %151 {offsets = [0, 96], sizes = [2, 32], strides = [1, 1]} : vector<2x128xf32> to vector<2x32xf32>
    %167 = arith.negf %166 : vector<2x32xf32>
    %168 = math.exp %167 : vector<2x32xf32>
    %cst_54 = arith.constant 1.000000e+00 : f32
    %169 = vector.broadcast %cst_54 : f32 to vector<2x32xf32>
    %170 = arith.addf %169, %168 : vector<2x32xf32>
    %171 = arith.divf %169, %170 : vector<2x32xf32>
    %172 = arith.mulf %163, %140 : vector<2x32xf32>
    %173 = arith.mulf %157, %165 : vector<2x32xf32>
    %174 = arith.addf %172, %173 : vector<2x32xf32>
    %175 = math.tanh %174 : vector<2x32xf32>
    %176 = arith.mulf %171, %175 : vector<2x32xf32>
    %177 = arith.index_cast %146 : i32 to index
    %c0_55 = arith.constant 0 : index
    %178 = vector.load %arg12[%177, %c0_55] : memref<16x32xf32, #tpu.memory_space<vmem>>, vector<2x32xf32>
    tpu.vector_store %arg12[%177, %c0_55], %176 {strides = array<i32>} : memref<16x32xf32, #tpu.memory_space<vmem>>, vector<2x32xf32>,
    %c5_i32 = arith.constant 5 : i32
    %c2_i32_56 = arith.constant 2 : i32
    %179 = arith.muli %c5_i32, %c2_i32_56 : i32
    %180 = tpu.assume_multiple %179, 2 : i32
    %181 = arith.index_cast %180 : i32 to index
    %c0_57 = arith.constant 0 : index
    %182 = vector.load %arg11[%181, %c0_57] : memref<16x128xf32, #tpu.memory_space<vmem>>, vector<2x128xf32>
    %c0_58 = arith.constant 0 : index
    %c0_59 = arith.constant 0 : index
    %183 = vector.load %arg4[%c0_58, %c0_59] : memref<32x128xf32, #tpu.memory_space<vmem>>, vector<32x128xf32>
    %cst_60 = arith.constant dense<0.000000e+00> : vector<2x128xf32>
    %184 = tpu.matmul %176, %183, %cst_60 {dimension_numbers = #tpu.dot_dimension_numbers<[1], [0], [0], [1], [0, 0, 1, 1], [], []>} : vector<2x32xf32>, vector<32x128xf32>, vector<2x128xf32> -> vector<2x128xf32>
    %185 = arith.addf %182, %184 : vector<2x128xf32>
    %186 = vector.extract_strided_slice %185 {offsets = [0, 0], sizes = [2, 32], strides = [1, 1]} : vector<2x128xf32> to vector<2x32xf32>
    %187 = arith.negf %186 : vector<2x32xf32>
    %188 = math.exp %187 : vector<2x32xf32>
    %cst_61 = arith.constant 1.000000e+00 : f32
    %189 = vector.broadcast %cst_61 : f32 to vector<2x32xf32>
    %190 = arith.addf %189, %188 : vector<2x32xf32>
    %191 = arith.divf %189, %190 : vector<2x32xf32>
    %192 = vector.extract_strided_slice %185 {offsets = [0, 32], sizes = [2, 32], strides = [1, 1]} : vector<2x128xf32> to vector<2x32xf32>
    %193 = arith.negf %192 : vector<2x32xf32>
    %194 = math.exp %193 : vector<2x32xf32>
    %cst_62 = arith.constant 1.000000e+00 : f32
    %195 = vector.broadcast %cst_62 : f32 to vector<2x32xf32>
    %196 = arith.addf %195, %194 : vector<2x32xf32>
    %197 = arith.divf %195, %196 : vector<2x32xf32>
    %198 = vector.extract_strided_slice %185 {offsets = [0, 64], sizes = [2, 32], strides = [1, 1]} : vector<2x128xf32> to vector<2x32xf32>
    %199 = math.tanh %198 : vector<2x32xf32>
    %200 = vector.extract_strided_slice %185 {offsets = [0, 96], sizes = [2, 32], strides = [1, 1]} : vector<2x128xf32> to vector<2x32xf32>
    %201 = arith.negf %200 : vector<2x32xf32>
    %202 = math.exp %201 : vector<2x32xf32>
    %cst_63 = arith.constant 1.000000e+00 : f32
    %203 = vector.broadcast %cst_63 : f32 to vector<2x32xf32>
    %204 = arith.addf %203, %202 : vector<2x32xf32>
    %205 = arith.divf %203, %204 : vector<2x32xf32>
    %206 = arith.mulf %197, %174 : vector<2x32xf32>
    %207 = arith.mulf %191, %199 : vector<2x32xf32>
    %208 = arith.addf %206, %207 : vector<2x32xf32>
    %209 = math.tanh %208 : vector<2x32xf32>
    %210 = arith.mulf %205, %209 : vector<2x32xf32>
    %211 = arith.index_cast %180 : i32 to index
    %c0_64 = arith.constant 0 : index
    %212 = vector.load %arg12[%211, %c0_64] : memref<16x32xf32, #tpu.memory_space<vmem>>, vector<2x32xf32>
    tpu.vector_store %arg12[%211, %c0_64], %210 {strides = array<i32>} : memref<16x32xf32, #tpu.memory_space<vmem>>, vector<2x32xf32>,
    %c6_i32 = arith.constant 6 : i32
    %c2_i32_65 = arith.constant 2 : i32
    %213 = arith.muli %c6_i32, %c2_i32_65 : i32
    %214 = tpu.assume_multiple %213, 2 : i32
    %215 = arith.index_cast %214 : i32 to index
    %c0_66 = arith.constant 0 : index
    %216 = vector.load %arg11[%215, %c0_66] : memref<16x128xf32, #tpu.memory_space<vmem>>, vector<2x128xf32>
    %c0_67 = arith.constant 0 : index
    %c0_68 = arith.constant 0 : index
    %217 = vector.load %arg4[%c0_67, %c0_68] : memref<32x128xf32, #tpu.memory_space<vmem>>, vector<32x128xf32>
    %cst_69 = arith.constant dense<0.000000e+00> : vector<2x128xf32>
    %218 = tpu.matmul %210, %217, %cst_69 {dimension_numbers = #tpu.dot_dimension_numbers<[1], [0], [0], [1], [0, 0, 1, 1], [], []>} : vector<2x32xf32>, vector<32x128xf32>, vector<2x128xf32> -> vector<2x128xf32>
    %219 = arith.addf %216, %218 : vector<2x128xf32>
    %220 = vector.extract_strided_slice %219 {offsets = [0, 0], sizes = [2, 32], strides = [1, 1]} : vector<2x128xf32> to vector<2x32xf32>
    %221 = arith.negf %220 : vector<2x32xf32>
    %222 = math.exp %221 : vector<2x32xf32>
    %cst_70 = arith.constant 1.000000e+00 : f32
    %223 = vector.broadcast %cst_70 : f32 to vector<2x32xf32>
    %224 = arith.addf %223, %222 : vector<2x32xf32>
    %225 = arith.divf %223, %224 : vector<2x32xf32>
    %226 = vector.extract_strided_slice %219 {offsets = [0, 32], sizes = [2, 32], strides = [1, 1]} : vector<2x128xf32> to vector<2x32xf32>
    %227 = arith.negf %226 : vector<2x32xf32>
    %228 = math.exp %227 : vector<2x32xf32>
    %cst_71 = arith.constant 1.000000e+00 : f32
    %229 = vector.broadcast %cst_71 : f32 to vector<2x32xf32>
    %230 = arith.addf %229, %228 : vector<2x32xf32>
    %231 = arith.divf %229, %230 : vector<2x32xf32>
    %232 = vector.extract_strided_slice %219 {offsets = [0, 64], sizes = [2, 32], strides = [1, 1]} : vector<2x128xf32> to vector<2x32xf32>
    %233 = math.tanh %232 : vector<2x32xf32>
    %234 = vector.extract_strided_slice %219 {offsets = [0, 96], sizes = [2, 32], strides = [1, 1]} : vector<2x128xf32> to vector<2x32xf32>
    %235 = arith.negf %234 : vector<2x32xf32>
    %236 = math.exp %235 : vector<2x32xf32>
    %cst_72 = arith.constant 1.000000e+00 : f32
    %237 = vector.broadcast %cst_72 : f32 to vector<2x32xf32>
    %238 = arith.addf %237, %236 : vector<2x32xf32>
    %239 = arith.divf %237, %238 : vector<2x32xf32>
    %240 = arith.mulf %231, %208 : vector<2x32xf32>
    %241 = arith.mulf %225, %233 : vector<2x32xf32>
    %242 = arith.addf %240, %241 : vector<2x32xf32>
    %243 = math.tanh %242 : vector<2x32xf32>
    %244 = arith.mulf %239, %243 : vector<2x32xf32>
    %245 = arith.index_cast %214 : i32 to index
    %c0_73 = arith.constant 0 : index
    %246 = vector.load %arg12[%245, %c0_73] : memref<16x32xf32, #tpu.memory_space<vmem>>, vector<2x32xf32>
    tpu.vector_store %arg12[%245, %c0_73], %244 {strides = array<i32>} : memref<16x32xf32, #tpu.memory_space<vmem>>, vector<2x32xf32>,
    %c7_i32 = arith.constant 7 : i32
    %c2_i32_74 = arith.constant 2 : i32
    %247 = arith.muli %c7_i32, %c2_i32_74 : i32
    %248 = tpu.assume_multiple %247, 2 : i32
    %249 = arith.index_cast %248 : i32 to index
    %c0_75 = arith.constant 0 : index
    %250 = vector.load %arg11[%249, %c0_75] : memref<16x128xf32, #tpu.memory_space<vmem>>, vector<2x128xf32>
    %c0_76 = arith.constant 0 : index
    %c0_77 = arith.constant 0 : index
    %251 = vector.load %arg4[%c0_76, %c0_77] : memref<32x128xf32, #tpu.memory_space<vmem>>, vector<32x128xf32>
    %cst_78 = arith.constant dense<0.000000e+00> : vector<2x128xf32>
    %252 = tpu.matmul %244, %251, %cst_78 {dimension_numbers = #tpu.dot_dimension_numbers<[1], [0], [0], [1], [0, 0, 1, 1], [], []>} : vector<2x32xf32>, vector<32x128xf32>, vector<2x128xf32> -> vector<2x128xf32>
    %253 = arith.addf %250, %252 : vector<2x128xf32>
    %254 = vector.extract_strided_slice %253 {offsets = [0, 0], sizes = [2, 32], strides = [1, 1]} : vector<2x128xf32> to vector<2x32xf32>
    %255 = arith.negf %254 : vector<2x32xf32>
    %256 = math.exp %255 : vector<2x32xf32>
    %cst_79 = arith.constant 1.000000e+00 : f32
    %257 = vector.broadcast %cst_79 : f32 to vector<2x32xf32>
    %258 = arith.addf %257, %256 : vector<2x32xf32>
    %259 = arith.divf %257, %258 : vector<2x32xf32>
    %260 = vector.extract_strided_slice %253 {offsets = [0, 32], sizes = [2, 32], strides = [1, 1]} : vector<2x128xf32> to vector<2x32xf32>
    %261 = arith.negf %260 : vector<2x32xf32>
    %262 = math.exp %261 : vector<2x32xf32>
    %cst_80 = arith.constant 1.000000e+00 : f32
    %263 = vector.broadcast %cst_80 : f32 to vector<2x32xf32>
    %264 = arith.addf %263, %262 : vector<2x32xf32>
    %265 = arith.divf %263, %264 : vector<2x32xf32>
    %266 = vector.extract_strided_slice %253 {offsets = [0, 64], sizes = [2, 32], strides = [1, 1]} : vector<2x128xf32> to vector<2x32xf32>
    %267 = math.tanh %266 : vector<2x32xf32>
    %268 = vector.extract_strided_slice %253 {offsets = [0, 96], sizes = [2, 32], strides = [1, 1]} : vector<2x128xf32> to vector<2x32xf32>
    %269 = arith.negf %268 : vector<2x32xf32>
    %270 = math.exp %269 : vector<2x32xf32>
    %cst_81 = arith.constant 1.000000e+00 : f32
    %271 = vector.broadcast %cst_81 : f32 to vector<2x32xf32>
    %272 = arith.addf %271, %270 : vector<2x32xf32>
    %273 = arith.divf %271, %272 : vector<2x32xf32>
    %274 = arith.mulf %265, %242 : vector<2x32xf32>
    %275 = arith.mulf %259, %267 : vector<2x32xf32>
    %276 = arith.addf %274, %275 : vector<2x32xf32>
    %277 = math.tanh %276 : vector<2x32xf32>
    %278 = arith.mulf %273, %277 : vector<2x32xf32>
    %279 = arith.index_cast %248 : i32 to index
    %c0_82 = arith.constant 0 : index
    %280 = vector.load %arg12[%279, %c0_82] : memref<16x32xf32, #tpu.memory_space<vmem>>, vector<2x32xf32>
    tpu.vector_store %arg12[%279, %c0_82], %278 {strides = array<i32>} : memref<16x32xf32, #tpu.memory_space<vmem>>, vector<2x32xf32>,
    %c8_i32 = arith.constant 8 : i32
    %c0_83 = arith.constant 0 : index
    %c0_84 = arith.constant 0 : index
    %281 = vector.load %arg9[%c0_83, %c0_84] : memref<2x32xf32, #tpu.memory_space<vmem>>, vector<2x32xf32>
    tpu.vector_store %arg9[%c0_83, %c0_84], %278 {strides = array<i32>} : memref<2x32xf32, #tpu.memory_space<vmem>>, vector<2x32xf32>,
    %c0_85 = arith.constant 0 : index
    %c0_86 = arith.constant 0 : index
    %282 = vector.load %arg10[%c0_85, %c0_86] : memref<2x32xf32, #tpu.memory_space<vmem>>, vector<2x32xf32>
    tpu.vector_store %arg10[%c0_85, %c0_86], %276 {strides = array<i32>} : memref<2x32xf32, #tpu.memory_space<vmem>>, vector<2x32xf32>,
    %c0_87 = arith.constant 0 : index
    %c0_88 = arith.constant 0 : index
    %283 = tpu.strided_load %arg12[%c0_87, %c0_88] {strides = array<i32: 2, 1>} : memref<16x32xf32, #tpu.memory_space<vmem>>, vector<8x32xf32>
    %c0_89 = arith.constant 0 : index
    %c0_90 = arith.constant 0 : index
    %284 = vector.load %arg6[%c0_89, %c0_90] : memref<32x128xf32, #tpu.memory_space<vmem>>, vector<32x128xf32>
    %cst_91 = arith.constant dense<0.000000e+00> : vector<8x128xf32>
    %285 = tpu.matmul %283, %284, %cst_91 {dimension_numbers = #tpu.dot_dimension_numbers<[1], [0], [0], [1], [0, 0, 1, 1], [], []>} : vector<8x32xf32>, vector<32x128xf32>, vector<8x128xf32> -> vector<8x128xf32>
    %c0_92 = arith.constant 0 : index
    %c0_93 = arith.constant 0 : index
    %286 = vector.load %arg7[%c0_92, %c0_93] : memref<1x128xf32, #tpu.memory_space<vmem>>, vector<1x128xf32>
    %287 = vector.broadcast %286 : vector<1x128xf32> to vector<8x128xf32>
    %288 = arith.addf %285, %287 : vector<8x128xf32>
    %cst_94 = arith.constant dense<0xFF800000> : vector<8xf32>
    %289 = vector.multi_reduction <maximumf>, %288, %cst_94 [1] : vector<8x128xf32> to vector<8xf32>
    %290 = vector.shape_cast %289 : vector<8xf32> to vector<8x1xf32>
    %291 = vector.broadcast %290 : vector<8x1xf32> to vector<8x128xf32>
    %292 = arith.subf %288, %291 : vector<8x128xf32>
    %293 = math.exp %292 : vector<8x128xf32>
    %cst_95 = arith.constant dense<0.000000e+00> : vector<8xf32>
    %294 = vector.multi_reduction <add>, %293, %cst_95 [1] : vector<8x128xf32> to vector<8xf32>
    %295 = vector.shape_cast %294 : vector<8xf32> to vector<8x1xf32>
    %296 = math.log %295 : vector<8x1xf32>
    %297 = arith.addf %296, %290 : vector<8x1xf32>
    %298 = vector.broadcast %297 : vector<8x1xf32> to vector<8x128xf32>
    %299 = arith.subf %288, %298 : vector<8x128xf32>
    %c0_96 = arith.constant 0 : index
    %c0_97 = arith.constant 0 : index
    %c0_98 = arith.constant 0 : index
    %300 = vector.load %arg8[%c0_96, %c0_97, %c0_98] : memref<2x8x128xf32, #tpu.memory_space<vmem>>, vector<1x8x128xf32>
    %301 = vector.shape_cast %300 : vector<1x8x128xf32> to vector<8x128xf32>
    %302 = vector.shape_cast %299 : vector<8x128xf32> to vector<1x8x128xf32>
    tpu.vector_store %arg8[%c0_96, %c0_97, %c0_98], %302 {strides = array<i32>} : memref<2x8x128xf32, #tpu.memory_space<vmem>>, vector<1x8x128xf32>,
    %c1 = arith.constant 1 : index
    %c0_99 = arith.constant 0 : index
    %303 = tpu.strided_load %arg12[%c1, %c0_99] {strides = array<i32: 2, 1>} : memref<16x32xf32, #tpu.memory_space<vmem>>, vector<8x32xf32>
    %c0_100 = arith.constant 0 : index
    %c0_101 = arith.constant 0 : index
    %304 = vector.load %arg6[%c0_100, %c0_101] : memref<32x128xf32, #tpu.memory_space<vmem>>, vector<32x128xf32>
    %cst_102 = arith.constant dense<0.000000e+00> : vector<8x128xf32>
    %305 = tpu.matmul %303, %304, %cst_102 {dimension_numbers = #tpu.dot_dimension_numbers<[1], [0], [0], [1], [0, 0, 1, 1], [], []>} : vector<8x32xf32>, vector<32x128xf32>, vector<8x128xf32> -> vector<8x128xf32>
    %c0_103 = arith.constant 0 : index
    %c0_104 = arith.constant 0 : index
    %306 = vector.load %arg7[%c0_103, %c0_104] : memref<1x128xf32, #tpu.memory_space<vmem>>, vector<1x128xf32>
    %307 = vector.broadcast %306 : vector<1x128xf32> to vector<8x128xf32>
    %308 = arith.addf %305, %307 : vector<8x128xf32>
    %cst_105 = arith.constant dense<0xFF800000> : vector<8xf32>
    %309 = vector.multi_reduction <maximumf>, %308, %cst_105 [1] : vector<8x128xf32> to vector<8xf32>
    %310 = vector.shape_cast %309 : vector<8xf32> to vector<8x1xf32>
    %311 = vector.broadcast %310 : vector<8x1xf32> to vector<8x128xf32>
    %312 = arith.subf %308, %311 : vector<8x128xf32>
    %313 = math.exp %312 : vector<8x128xf32>
    %cst_106 = arith.constant dense<0.000000e+00> : vector<8xf32>
    %314 = vector.multi_reduction <add>, %313, %cst_106 [1] : vector<8x128xf32> to vector<8xf32>
    %315 = vector.shape_cast %314 : vector<8xf32> to vector<8x1xf32>
    %316 = math.log %315 : vector<8x1xf32>
    %317 = arith.addf %316, %310 : vector<8x1xf32>
    %318 = vector.broadcast %317 : vector<8x1xf32> to vector<8x128xf32>
    %319 = arith.subf %308, %318 : vector<8x128xf32>
    %c1_107 = arith.constant 1 : index
    %c0_108 = arith.constant 0 : index
    %c0_109 = arith.constant 0 : index
    %320 = vector.load %arg8[%c1_107, %c0_108, %c0_109] : memref<2x8x128xf32, #tpu.memory_space<vmem>>, vector<1x8x128xf32>
    %321 = vector.shape_cast %320 : vector<1x8x128xf32> to vector<8x128xf32>
    %322 = vector.shape_cast %319 : vector<8x128xf32> to vector<1x8x128xf32>
    tpu.vector_store %arg8[%c1_107, %c0_108, %c0_109], %322 {strides = array<i32>} : memref<2x8x128xf32, #tpu.memory_space<vmem>>, vector<1x8x128xf32>,
    return
  }
}

</mosaic_0001>

<llo_original>
// kernel: tpu_custom_call.1
$region0: #{tpu_custom_call.1}
  #allocation0 [shape = 'u32[]', space=smem, size = 0x4, offset = 0x4, fixed_abs, tag = 'smem constant byte address 0x4 - core index']
  #allocation1 [shape = 'u32[144,128]{1,0:T(1,128)}', space=vmem, size = 0x12000, scoped, tag = 'internal scratch']
  #allocation2 [shape = 'f32[16,128]{1,0:T(8,128)}', space=vmem, size = 0x2000, scoped, tag = 'scratch operand']
  #allocation3 [shape = 'f32[16,32]{1,0:T(8,128)}', space=vmem, size = 0x2000, scoped, tag = 'scratch operand']
  %s0 = inlined_call_operand.hbm [shape: f32[16,32], index: 0, kind: input, shape index: {}]
  %s1 = inlined_call_operand.vmem [shape: f32[2,32], index: 1, kind: input, shape index: {}]
  %s2 = inlined_call_operand.vmem [shape: f32[2,32], index: 2, kind: input, shape index: {}]
  %s3 = inlined_call_operand.hbm [shape: f32[32,128], index: 3, kind: input, shape index: {}]
  %s4 = inlined_call_operand.hbm [shape: f32[32,128], index: 4, kind: input, shape index: {}]
  %s5 = inlined_call_operand.vmem [shape: f32[1,128], index: 5, kind: input, shape index: {}]
  %s6 = inlined_call_operand.hbm [shape: f32[32,128], index: 6, kind: input, shape index: {}]
  %s7 = inlined_call_operand.vmem [shape: f32[1,128], index: 7, kind: input, shape index: {}]
  %s8 = inlined_call_operand.hbm [shape: f32[2,8,128], index: 8, kind: output, shape index: {0}]
  %s9 = inlined_call_operand.hbm [shape: f32[2,32], index: 9, kind: output, shape index: {1}]
  %s10 = inlined_call_operand.hbm [shape: f32[2,32], index: 10, kind: output, shape index: {2}]
  %11 = xla_tuple %s8, %s9, %s10
  %s12 = sld [smem:[#allocation0]]
  $region74: #{tpu_custom_call.1} parent=0
    _
  %s14 = ssub.s32 1, %s12
  %s15 = scalar_select 0, %s14, %s12
  $region1: #{tpu_custom_call.1} parent=0
    #allocation4 [shape = 'u8[8192]{0}', space=vmem, size = 0x2000, scoped, tag = 'input window, operand 0, single buffered']
    #allocation5 [shape = 's32[1]{0}', space=sflag, size = 0x4, scoped, tag = 'scoped memory for tpu_custom_call.1']
    #allocation6 [shape = 's32[1]{0}', space=sflag, size = 0x4, scoped, tag = 'scoped memory for tpu_custom_call.1']
    #allocation7 [shape = 'u8[16384]{0}', space=vmem, size = 0x4000, scoped, tag = 'input window, operand 3, single buffered']
    #allocation8 [shape = 's32[1]{0}', space=sflag, size = 0x4, scoped, tag = 'scoped memory for tpu_custom_call.1']
    #allocation9 [shape = 'u8[16384]{0}', space=vmem, size = 0x4000, scoped, tag = 'input window, operand 4, single buffered']
    #allocation10 [shape = 'u8[16384]{0}', space=vmem, size = 0x4000, scoped, tag = 'input window, operand 6, single buffered']
    #allocation11 [shape = 's32[1]{0}', space=sflag, size = 0x4, scoped, tag = 'scoped memory for tpu_custom_call.1']
    #allocation12 [shape = 'u8[8192]{0}', space=vmem, size = 0x2000, scoped, tag = 'output window, operand 0, single buffered']
    #allocation13 [shape = 'u8[1024]{0}', space=vmem, size = 0x400, scoped, tag = 'output window, operand 1, single buffered']
    #allocation14 [shape = 's32[1]{0}', space=sflag, size = 0x4, scoped, tag = 'scoped memory for tpu_custom_call.1']
    #allocation15 [shape = 'u8[1024]{0}', space=vmem, size = 0x400, scoped, tag = 'output window, operand 2, single buffered']
    %16 = vsyncpa [#allocation5], 0
    %17 = vsyncpa [#allocation8], 0
    %18 = vsyncpa [#allocation11], 0
    %19 = vsyncpa [#allocation6], 0
    %20 = vsyncpa [#allocation14], 0
    // Predicated region
    $region2: #{tpu_custom_call.1} parent=1 // pred_check
      _
    $region3: #{tpu_custom_call.1} parent=1 // pred_check_branch
      %22 = sbr.rel (0) target = $region5
    $region4: #{tpu_custom_call.1} parent=1 // pred_region
      %s24 = ssub.s32 256, 256
      %25 = vsyncadd [#allocation5], %s24
      %s26 = sshll.u32 [#allocation4], 4
      %s27 = int_to_ptr.vmem [resolvable:$true] %s26
      %32 = dma.hbm_to_vmem [thread:$0]  %s0, 256, %s27, [#allocation5], 128, 128, 8
    $region5: #{tpu_custom_call.1} parent=1 // pred_fallthru
      _
    // Predicated region
    $region6: #{tpu_custom_call.1} parent=1 // pred_check
      _
    $region7: #{tpu_custom_call.1} parent=1 // pred_check_branch
      %34 = sbr.rel (0) target = $region9
    $region8: #{tpu_custom_call.1} parent=1 // pred_region
      _
    $region9: #{tpu_custom_call.1} parent=1 // pred_fallthru
      _
    // Predicated region
    $region10: #{tpu_custom_call.1} parent=1 // pred_check
      _
    $region11: #{tpu_custom_call.1} parent=1 // pred_check_branch
      %36 = sbr.rel (0) target = $region13
    $region12: #{tpu_custom_call.1} parent=1 // pred_region
      _
    $region13: #{tpu_custom_call.1} parent=1 // pred_fallthru
      _
    // Predicated region
    $region14: #{tpu_custom_call.1} parent=1 // pred_check
      _
    $region15: #{tpu_custom_call.1} parent=1 // pred_check_branch
      %38 = sbr.rel (0) target = $region17
    $region16: #{tpu_custom_call.1} parent=1 // pred_region
      %s40 = ssub.s32 512, 512
      %41 = vsyncadd [#allocation8], %s40
      %s42 = sshll.u32 [#allocation7], 4
      %s43 = int_to_ptr.vmem [resolvable:$true] %s42
      %48 = dma.hbm_to_vmem [thread:$0]  %s3, 512, %s43, [#allocation8], 128, 128, 8
    $region17: #{tpu_custom_call.1} parent=1 // pred_fallthru
      _
    // Predicated region
    $region18: #{tpu_custom_call.1} parent=1 // pred_check
      _
    $region19: #{tpu_custom_call.1} parent=1 // pred_check_branch
      %50 = sbr.rel (0) target = $region21
    $region20: #{tpu_custom_call.1} parent=1 // pred_region
      %s52 = ssub.s32 512, 512
      %53 = vsyncadd [#allocation8], %s52
      %s54 = sshll.u32 [#allocation9], 4
      %s55 = int_to_ptr.vmem [resolvable:$true] %s54
      %60 = dma.hbm_to_vmem [thread:$0]  %s4, 512, %s55, [#allocation8], 128, 128, 8
    $region21: #{tpu_custom_call.1} parent=1 // pred_fallthru
      _
    // Predicated region
    $region22: #{tpu_custom_call.1} parent=1 // pred_check
      _
    $region23: #{tpu_custom_call.1} parent=1 // pred_check_branch
      %62 = sbr.rel (0) target = $region25
    $region24: #{tpu_custom_call.1} parent=1 // pred_region
      _
    $region25: #{tpu_custom_call.1} parent=1 // pred_fallthru
      _
    // Predicated region
    $region26: #{tpu_custom_call.1} parent=1 // pred_check
      _
    $region27: #{tpu_custom_call.1} parent=1 // pred_check_branch
      %64 = sbr.rel (0) target = $region29
    $region28: #{tpu_custom_call.1} parent=1 // pred_region
      %s66 = ssub.s32 512, 512
      %67 = vsyncadd [#allocation11], %s66
      %s68 = sshll.u32 [#allocation10], 4
      %s69 = int_to_ptr.vmem [resolvable:$true] %s68
      %74 = dma.hbm_to_vmem [thread:$0]  %s6, 512, %s69, [#allocation11], 128, 128, 8
    $region29: #{tpu_custom_call.1} parent=1 // pred_fallthru
      _
    // Predicated region
    $region30: #{tpu_custom_call.1} parent=1 // pred_check
      _
    $region31: #{tpu_custom_call.1} parent=1 // pred_check_branch
      %76 = sbr.rel (0) target = $region33
    $region32: #{tpu_custom_call.1} parent=1 // pred_region
      _
    $region33: #{tpu_custom_call.1} parent=1 // pred_fallthru
      _
    // Predicated region
    $region34: #{tpu_custom_call.1} parent=1 // pred_check
      _
    $region35: #{tpu_custom_call.1} parent=1 // pred_check_branch
      %78 = sbr.rel (0) target = $region37
    $region36: #{tpu_custom_call.1} parent=1 // pred_region
      %79 = dma.done [#allocation5], 256
    $region37: #{tpu_custom_call.1} parent=1 // pred_fallthru
      _
    // Predicated region
    $region38: #{tpu_custom_call.1} parent=1 // pred_check
      _
    $region39: #{tpu_custom_call.1} parent=1 // pred_check_branch
      %81 = sbr.rel (0) target = $region41
    $region40: #{tpu_custom_call.1} parent=1 // pred_region
      %82 = dma.done [#allocation8], 512
    $region41: #{tpu_custom_call.1} parent=1 // pred_fallthru
      _
    // Predicated region
    $region42: #{tpu_custom_call.1} parent=1 // pred_check
      _
    $region43: #{tpu_custom_call.1} parent=1 // pred_check_branch
      %84 = sbr.rel (0) target = $region45
    $region44: #{tpu_custom_call.1} parent=1 // pred_region
      %85 = dma.done [#allocation8], 512
    $region45: #{tpu_custom_call.1} parent=1 // pred_fallthru
      _
    // Predicated region
    $region46: #{tpu_custom_call.1} parent=1 // pred_check
      _
    $region47: #{tpu_custom_call.1} parent=1 // pred_check_branch
      %87 = sbr.rel (0) target = $region49
    $region48: #{tpu_custom_call.1} parent=1 // pred_region
      %88 = dma.done [#allocation11], 512
    $region49: #{tpu_custom_call.1} parent=1 // pred_fallthru
      _
    %v89 = vld [vmem:[#allocation4] sm:$0xff]
    %v90 = vld [vmem:[#allocation4 + $0x8] sm:$0xff]
    %v91 = vld [vmem:[#allocation7] sm:$0xff]
    %v92 = vld [vmem:[#allocation7 + $0x8] sm:$0xff]
    %v93 = vld [vmem:[#allocation7 + $0x10] sm:$0xff]
    %v94 = vld [vmem:[#allocation7 + $0x18] sm:$0xff]
    %v95 = vld [vmem:[%s5] sm:$0x1]
    %v97 = vlaneseq
    %v98 = vshrl.u32 %v97, 7
    %v99 = vsub.s32 0, %v98
    %v100 = vrot.slane %v95, %v99
    %vm102 = vcmask 261120
    %v104 = vsel %vm102, %v89, 0
    %v107 = vsel %vm102, %v90, 0
    %109 = vmatprep.subr.mxu0 0.0
    %110 = vmatpush1.msra.mxu0 %v91
    %111 = vmatprep.subr.mxu0 0.0
    %112 = vmatpush1.msra.mxu0 %v92
    %113 = vmatprep.subr.mxu0 0.0
    %114 = vmatpush1.msra.mxu0 %v93
    %115 = vmatprep.subr.mxu0 0.0
    %116 = vmatpush1.msra.mxu0 %v94
    %117 = vmatprep.subr.mxu0 0.0
    %118 = vmatpush1.msra.mxu0 0.0
    %119 = vmatprep.subr.mxu0 0.0
    %120 = vmatpush1.msra.mxu0 0.0
    %121 = vmatprep.subr.mxu0 0.0
    %122 = vmatpush1.msra.mxu0 0.0
    %123 = vmatprep.subr.mxu0 0.0
    %124 = vmatpush1.msra.mxu0 0.0
    %125 = vmatprep.subr.mxu0 0.0
    %126 = vmatpush1.msra.mxu0 0.0
    %127 = vmatprep.subr.mxu0 0.0
    %128 = vmatpush1.msra.mxu0 0.0
    %129 = vmatprep.subr.mxu0 0.0
    %130 = vmatpush1.msra.mxu0 0.0
    %131 = vmatprep.subr.mxu0 0.0
    %132 = vmatpush1.msra.mxu0 0.0
    %133 = vmatprep.subr.mxu0 0.0
    %134 = vmatpush1.msra.mxu0 0.0
    %135 = vmatprep.subr.mxu0 0.0
    %136 = vmatpush1.msra.mxu0 0.0
    %137 = vmatprep.subr.mxu0 0.0
    %138 = vmatpush1.msra.mxu0 0.0
    %139 = vmatprep.subr.mxu0 0.0
    %140 = vmatpush1.msra.mxu0 0.0
    %141 = vmatprep.subr.mxu0 0.0
    %142 = vmatpush1.msra.mxu0 0.0
    %143 = vmatprep.subr.mxu0 0.0
    %144 = vmatpush1.msra.mxu0 0.0
    %145 = vmatprep.subr.mxu0 0.0
    %146 = vmatpush1.msra.mxu0 0.0
    %147 = vmatprep.subr.mxu0 0.0
    %148 = vmatpush1.msra.mxu0 0.0
    %149 = vmatprep.subr.mxu0 0.0
    %150 = vmatpush1.msra.mxu0 0.0
    %151 = vmatprep.subr.mxu0 0.0
    %152 = vmatpush1.msra.mxu0 0.0
    %153 = vmatprep.subr.mxu0 0.0
    %154 = vmatpush1.msra.mxu0 0.0
    %155 = vmatprep.subr.mxu0 0.0
    %156 = vmatpush1.msra.mxu0 0.0
    %157 = vmatprep.subr.mxu0 0.0
    %158 = vmatpush1.msra.mxu0 0.0
    %159 = vmatprep.subr.mxu0 0.0
    %160 = vmatpush1.msra.mxu0 0.0
    %161 = vmatprep.subr.mxu0 0.0
    %162 = vmatpush1.msra.mxu0 0.0
    %163 = vmatprep.subr.mxu0 0.0
    %164 = vmatpush1.msra.mxu0 0.0
    %165 = vmatprep.subr.mxu0 0.0
    %166 = vmatpush1.msra.mxu0 0.0
    %167 = vmatprep.subr.mxu0 0.0
    %168 = vmatpush1.msra.mxu0 0.0
    %169 = vmatprep.subr.mxu0 0.0
    %170 = vmatpush1.msra.mxu0 0.0
    %171 = vmatprep.subr.mxu0 0.0
    %172 = vmatpush1.msra.mxu0 0.0
    %173 = vmatprep.mubr.f32.mxu0 0.0
    %174 = vmatmul.mubr.f32.gmra.mrb[0].mxu0 %v104
    %v175 = vpop.f32.mrb[0].mxu0
    %v176 = vadd.f32 %v100, %v175
    %v177 = vpop.f32.mrb[0].mxu0
    %178 = vmatprep.mubr.f32.mxu0 0.0
    %179 = vmatmul.mubr.f32.gmra.mrb[0].mxu0 %v107
    %v180 = vpop.f32.mrb[0].mxu0
    %v181 = vadd.f32 %v100, %v180
    %v182 = vpop.f32.mrb[0].mxu0
    %183 = vdwg.mxu0
    %184 = vst [vmem:[#allocation2] sm:$0xff] %v176
    %185 = vst [vmem:[#allocation2 + $0x8] sm:$0xff] %v181
    %v186 = vld [vmem:[%s1] sm:$0x3]
    %v187 = vld [vmem:[%s2] sm:$0x3]
    %v188 = vld [vmem:[#allocation2] sm:$0x3]
    %v189 = vld [vmem:[#allocation9] sm:$0xff]
    %v190 = vld [vmem:[#allocation9 + $0x8] sm:$0xff]
    %v191 = vld [vmem:[#allocation9 + $0x10] sm:$0xff]
    %v192 = vld [vmem:[#allocation9 + $0x18] sm:$0xff]
    %v194 = vsel %vm102, %v186, 0
    %196 = vmatprep.subr.mxu0 0.0
    %197 = vmatpush1.msra.mxu0 %v189
    %198 = vmatprep.subr.mxu0 0.0
    %199 = vmatpush1.msra.mxu0 %v190
    %200 = vmatprep.subr.mxu0 0.0
    %201 = vmatpush1.msra.mxu0 %v191
    %202 = vmatprep.subr.mxu0 0.0
    %203 = vmatpush1.msra.mxu0 %v192
    %204 = vmatprep.subr.mxu0 0.0
    %205 = vmatpush1.msra.mxu0 0.0
    %206 = vmatprep.subr.mxu0 0.0
    %207 = vmatpush1.msra.mxu0 0.0
    %208 = vmatprep.subr.mxu0 0.0
    %209 = vmatpush1.msra.mxu0 0.0
    %210 = vmatprep.subr.mxu0 0.0
    %211 = vmatpush1.msra.mxu0 0.0
    %212 = vmatprep.subr.mxu0 0.0
    %213 = vmatpush1.msra.mxu0 0.0
    %214 = vmatprep.subr.mxu0 0.0
    %215 = vmatpush1.msra.mxu0 0.0
    %216 = vmatprep.subr.mxu0 0.0
    %217 = vmatpush1.msra.mxu0 0.0
    %218 = vmatprep.subr.mxu0 0.0
    %219 = vmatpush1.msra.mxu0 0.0
    %220 = vmatprep.subr.mxu0 0.0
    %221 = vmatpush1.msra.mxu0 0.0
    %222 = vmatprep.subr.mxu0 0.0
    %223 = vmatpush1.msra.mxu0 0.0
    %224 = vmatprep.subr.mxu0 0.0
    %225 = vmatpush1.msra.mxu0 0.0
    %226 = vmatprep.subr.mxu0 0.0
    %227 = vmatpush1.msra.mxu0 0.0
    %228 = vmatprep.subr.mxu0 0.0
    %229 = vmatpush1.msra.mxu0 0.0
    %230 = vmatprep.subr.mxu0 0.0
    %231 = vmatpush1.msra.mxu0 0.0
    %232 = vmatprep.subr.mxu0 0.0
    %233 = vmatpush1.msra.mxu0 0.0
    %234 = vmatprep.subr.mxu0 0.0
    %235 = vmatpush1.msra.mxu0 0.0
    %236 = vmatprep.subr.mxu0 0.0
    %237 = vmatpush1.msra.mxu0 0.0
    %238 = vmatprep.subr.mxu0 0.0
    %239 = vmatpush1.msra.mxu0 0.0
    %240 = vmatprep.subr.mxu0 0.0
    %241 = vmatpush1.msra.mxu0 0.0
    %242 = vmatprep.subr.mxu0 0.0
    %243 = vmatpush1.msra.mxu0 0.0
    %244 = vmatprep.subr.mxu0 0.0
    %245 = vmatpush1.msra.mxu0 0.0
    %246 = vmatprep.subr.mxu0 0.0
    %247 = vmatpush1.msra.mxu0 0.0
    %248 = vmatprep.subr.mxu0 0.0
    %249 = vmatpush1.msra.mxu0 0.0
    %250 = vmatprep.subr.mxu0 0.0
    %251 = vmatpush1.msra.mxu0 0.0
    %252 = vmatprep.subr.mxu0 0.0
    %253 = vmatpush1.msra.mxu0 0.0
    %254 = vmatprep.subr.mxu0 0.0
    %255 = vmatpush1.msra.mxu0 0.0
    %256 = vmatprep.subr.mxu0 0.0
    %257 = vmatpush1.msra.mxu0 0.0
    %258 = vmatprep.subr.mxu0 0.0
    %259 = vmatpush1.msra.mxu0 0.0
    %260 = vmatprep.mubr.f32.mxu0 0.0
    %261 = vmatmul.mubr.f32.gmra.mrb[0].mxu0 %v194
    %v262 = vpop.f32.mrb[0].mxu0
    %v263 = vadd.f32 0.0, %v262
    %v264 = vpop.f32.mrb[0].mxu0
    %265 = vdwg.mxu0
    %v266 = vadd.f32 %v188, %v263
    %v267 = vxor.u32 %v266, 2147483648
    %v268 = vmul.f32 %v267, 1.442695
    %v269 = vpow.pop %v268
    %v270 = vadd.f32 %v269, 1.0
    %v271 = vrcp.pop %v270
    %v272 = vmul.f32 1.0, %v271
    %v273 = vtanh.pop %v266
    %275 = vrot.lane.b32.xlu0 %v187, 32
    %v276 = vpop.permute.xlu0 %275
    %v278 = vmul.f32 %v272, %v276
    %280 = vrot.lane.b32.xlu0 %v273, 64
    %v281 = vpop.permute.xlu0 %280
    %v283 = vmul.f32 %v272, %v281
    %285 = vrot.lane.b32.xlu0 %v283, 32
    %v286 = vpop.permute.xlu0 %285
    %v288 = vadd.f32 %v278, %v286
    %v289 = vtanh.pop %v288
    %291 = vrot.lane.b32.xlu0 %v289, 64
    %v292 = vpop.permute.xlu0 %291
    %v294 = vmul.f32 %v272, %v292
    %296 = vrot.lane.b32.xlu0 %v294, 32
    %v297 = vpop.permute.xlu0 %296
    %vm299 = vcmask 254976
    %300 = vst.msk [vmem:[#allocation3] sm:$0x3] %vm299, %v297
    %s301 = scalar_lea.vmem [#allocation2], 2
    %v302 = vld [vmem:[%s301] sm:$0x3]
    %v303 = vld [vmem:[#allocation9] sm:$0xff]
    %v304 = vld [vmem:[#allocation9 + $0x8] sm:$0xff]
    %v305 = vld [vmem:[#allocation9 + $0x10] sm:$0xff]
    %v306 = vld [vmem:[#allocation9 + $0x18] sm:$0xff]
    %v307 = vsel %vm102, %v297, 0
    %309 = vmatprep.subr.mxu0 0.0
    %310 = vmatpush1.msra.mxu0 %v303
    %311 = vmatprep.subr.mxu0 0.0
    %312 = vmatpush1.msra.mxu0 %v304
    %313 = vmatprep.subr.mxu0 0.0
    %314 = vmatpush1.msra.mxu0 %v305
    %315 = vmatprep.subr.mxu0 0.0
    %316 = vmatpush1.msra.mxu0 %v306
    %317 = vmatprep.subr.mxu0 0.0
    %318 = vmatpush1.msra.mxu0 0.0
    %319 = vmatprep.subr.mxu0 0.0
    %320 = vmatpush1.msra.mxu0 0.0
    %321 = vmatprep.subr.mxu0 0.0
    %322 = vmatpush1.msra.mxu0 0.0
    %323 = vmatprep.subr.mxu0 0.0
    %324 = vmatpush1.msra.mxu0 0.0
    %325 = vmatprep.subr.mxu0 0.0
    %326 = vmatpush1.msra.mxu0 0.0
    %327 = vmatprep.subr.mxu0 0.0
    %328 = vmatpush1.msra.mxu0 0.0
    %329 = vmatprep.subr.mxu0 0.0
    %330 = vmatpush1.msra.mxu0 0.0
    %331 = vmatprep.subr.mxu0 0.0
    %332 = vmatpush1.msra.mxu0 0.0
    %333 = vmatprep.subr.mxu0 0.0
    %334 = vmatpush1.msra.mxu0 0.0
    %335 = vmatprep.subr.mxu0 0.0
    %336 = vmatpush1.msra.mxu0 0.0
    %337 = vmatprep.subr.mxu0 0.0
    %338 = vmatpush1.msra.mxu0 0.0
    %339 = vmatprep.subr.mxu0 0.0
    %340 = vmatpush1.msra.mxu0 0.0
    %341 = vmatprep.subr.mxu0 0.0
    %342 = vmatpush1.msra.mxu0 0.0
    %343 = vmatprep.subr.mxu0 0.0
    %344 = vmatpush1.msra.mxu0 0.0
    %345 = vmatprep.subr.mxu0 0.0
    %346 = vmatpush1.msra.mxu0 0.0
    %347 = vmatprep.subr.mxu0 0.0
    %348 = vmatpush1.msra.mxu0 0.0
    %349 = vmatprep.subr.mxu0 0.0
    %350 = vmatpush1.msra.mxu0 0.0
    %351 = vmatprep.subr.mxu0 0.0
    %352 = vmatpush1.msra.mxu0 0.0
    %353 = vmatprep.subr.mxu0 0.0
    %354 = vmatpush1.msra.mxu0 0.0
    %355 = vmatprep.subr.mxu0 0.0
    %356 = vmatpush1.msra.mxu0 0.0
    %357 = vmatprep.subr.mxu0 0.0
    %358 = vmatpush1.msra.mxu0 0.0
    %359 = vmatprep.subr.mxu0 0.0
    %360 = vmatpush1.msra.mxu0 0.0
    %361 = vmatprep.subr.mxu0 0.0
    %362 = vmatpush1.msra.mxu0 0.0
    %363 = vmatprep.subr.mxu0 0.0
    %364 = vmatpush1.msra.mxu0 0.0
    %365 = vmatprep.subr.mxu0 0.0
    %366 = vmatpush1.msra.mxu0 0.0
    %367 = vmatprep.subr.mxu0 0.0
    %368 = vmatpush1.msra.mxu0 0.0
    %369 = vmatprep.subr.mxu0 0.0
    %370 = vmatpush1.msra.mxu0 0.0
    %371 = vmatprep.subr.mxu0 0.0
    %372 = vmatpush1.msra.mxu0 0.0
    %373 = vmatprep.mubr.f32.mxu0 0.0
    %374 = vmatmul.mubr.f32.gmra.mrb[0].mxu0 %v307
    %v375 = vpop.f32.mrb[0].mxu0
    %v376 = vadd.f32 0.0, %v375
    %v377 = vpop.f32.mrb[0].mxu0
    %378 = vdwg.mxu0
    %v379 = vadd.f32 %v302, %v376
    %v380 = vxor.u32 %v379, 2147483648
    %v381 = vmul.f32 %v380, 1.442695
    %v382 = vpow.pop %v381
    %v383 = vadd.f32 %v382, 1.0
    %v384 = vrcp.pop %v383
    %v385 = vmul.f32 1.0, %v384
    %v386 = vtanh.pop %v379
    %v387 = vmul.f32 %v385, %v288
    %389 = vrot.lane.b32.xlu0 %v386, 64
    %v390 = vpop.permute.xlu0 %389
    %v392 = vmul.f32 %v385, %v390
    %394 = vrot.lane.b32.xlu0 %v392, 32
    %v395 = vpop.permute.xlu0 %394
    %v397 = vadd.f32 %v387, %v395
    %v398 = vtanh.pop %v397
    %400 = vrot.lane.b32.xlu0 %v398, 64
    %v401 = vpop.permute.xlu0 %400
    %v403 = vmul.f32 %v385, %v401
    %405 = vrot.lane.b32.xlu0 %v403, 32
    %v406 = vpop.permute.xlu0 %405
    %s408 = scalar_lea.vmem [#allocation3], 2
    %409 = vst.msk [vmem:[%s408] sm:$0x3] %vm299, %v406
    %s410 = scalar_lea.vmem [#allocation2], 4
    %v411 = vld [vmem:[%s410] sm:$0x3]
    %v412 = vld [vmem:[#allocation9] sm:$0xff]
    %v413 = vld [vmem:[#allocation9 + $0x8] sm:$0xff]
    %v414 = vld [vmem:[#allocation9 + $0x10] sm:$0xff]
    %v415 = vld [vmem:[#allocation9 + $0x18] sm:$0xff]
    %v416 = vsel %vm102, %v406, 0
    %418 = vmatprep.subr.mxu0 0.0
    %419 = vmatpush1.msra.mxu0 %v412
    %420 = vmatprep.subr.mxu0 0.0
    %421 = vmatpush1.msra.mxu0 %v413
    %422 = vmatprep.subr.mxu0 0.0
    %423 = vmatpush1.msra.mxu0 %v414
    %424 = vmatprep.subr.mxu0 0.0
    %425 = vmatpush1.msra.mxu0 %v415
    %426 = vmatprep.subr.mxu0 0.0
    %427 = vmatpush1.msra.mxu0 0.0
    %428 = vmatprep.subr.mxu0 0.0
    %429 = vmatpush1.msra.mxu0 0.0
    %430 = vmatprep.subr.mxu0 0.0
    %431 = vmatpush1.msra.mxu0 0.0
    %432 = vmatprep.subr.mxu0 0.0
    %433 = vmatpush1.msra.mxu0 0.0
    %434 = vmatprep.subr.mxu0 0.0
    %435 = vmatpush1.msra.mxu0 0.0
    %436 = vmatprep.subr.mxu0 0.0
    %437 = vmatpush1.msra.mxu0 0.0
    %438 = vmatprep.subr.mxu0 0.0
    %439 = vmatpush1.msra.mxu0 0.0
    %440 = vmatprep.subr.mxu0 0.0
    %441 = vmatpush1.msra.mxu0 0.0
    %442 = vmatprep.subr.mxu0 0.0
    %443 = vmatpush1.msra.mxu0 0.0
    %444 = vmatprep.subr.mxu0 0.0
    %445 = vmatpush1.msra.mxu0 0.0
    %446 = vmatprep.subr.mxu0 0.0
    %447 = vmatpush1.msra.mxu0 0.0
    %448 = vmatprep.subr.mxu0 0.0
    %449 = vmatpush1.msra.mxu0 0.0
    %450 = vmatprep.subr.mxu0 0.0
    %451 = vmatpush1.msra.mxu0 0.0
    %452 = vmatprep.subr.mxu0 0.0
    %453 = vmatpush1.msra.mxu0 0.0
    %454 = vmatprep.subr.mxu0 0.0
    %455 = vmatpush1.msra.mxu0 0.0
    %456 = vmatprep.subr.mxu0 0.0
    %457 = vmatpush1.msra.mxu0 0.0
    %458 = vmatprep.subr.mxu0 0.0
    %459 = vmatpush1.msra.mxu0 0.0
    %460 = vmatprep.subr.mxu0 0.0
    %461 = vmatpush1.msra.mxu0 0.0
    %462 = vmatprep.subr.mxu0 0.0
    %463 = vmatpush1.msra.mxu0 0.0
    %464 = vmatprep.subr.mxu0 0.0
    %465 = vmatpush1.msra.mxu0 0.0
    %466 = vmatprep.subr.mxu0 0.0
    %467 = vmatpush1.msra.mxu0 0.0
    %468 = vmatprep.subr.mxu0 0.0
    %469 = vmatpush1.msra.mxu0 0.0
    %470 = vmatprep.subr.mxu0 0.0
    %471 = vmatpush1.msra.mxu0 0.0
    %472 = vmatprep.subr.mxu0 0.0
    %473 = vmatpush1.msra.mxu0 0.0
    %474 = vmatprep.subr.mxu0 0.0
    %475 = vmatpush1.msra.mxu0 0.0
    %476 = vmatprep.subr.mxu0 0.0
    %477 = vmatpush1.msra.mxu0 0.0
    %478 = vmatprep.subr.mxu0 0.0
    %479 = vmatpush1.msra.mxu0 0.0
    %480 = vmatprep.subr.mxu0 0.0
    %481 = vmatpush1.msra.mxu0 0.0
    %482 = vmatprep.mubr.f32.mxu0 0.0
    %483 = vmatmul.mubr.f32.gmra.mrb[0].mxu0 %v416
    %v484 = vpop.f32.mrb[0].mxu0
    %v485 = vadd.f32 0.0, %v484
    %v486 = vpop.f32.mrb[0].mxu0
    %487 = vdwg.mxu0
    %v488 = vadd.f32 %v411, %v485
    %v489 = vxor.u32 %v488, 2147483648
    %v490 = vmul.f32 %v489, 1.442695
    %v491 = vpow.pop %v490
    %v492 = vadd.f32 %v491, 1.0
    %v493 = vrcp.pop %v492
    %v494 = vmul.f32 1.0, %v493
    %v495 = vtanh.pop %v488
    %v496 = vmul.f32 %v494, %v397
    %498 = vrot.lane.b32.xlu0 %v495, 64
    %v499 = vpop.permute.xlu0 %498
    %v501 = vmul.f32 %v494, %v499
    %503 = vrot.lane.b32.xlu0 %v501, 32
    %v504 = vpop.permute.xlu0 %503
    %v506 = vadd.f32 %v496, %v504
    %v507 = vtanh.pop %v506
    %509 = vrot.lane.b32.xlu0 %v507, 64
    %v510 = vpop.permute.xlu0 %509
    %v512 = vmul.f32 %v494, %v510
    %514 = vrot.lane.b32.xlu0 %v512, 32
    %v515 = vpop.permute.xlu0 %514
    %s517 = scalar_lea.vmem [#allocation3], 4
    %518 = vst.msk [vmem:[%s517] sm:$0x3] %vm299, %v515
    %s519 = scalar_lea.vmem [#allocation2], 6
    %v520 = vld [vmem:[%s519] sm:$0x3]
    %v521 = vld [vmem:[#allocation9] sm:$0xff]
    %v522 = vld [vmem:[#allocation9 + $0x8] sm:$0xff]
    %v523 = vld [vmem:[#allocation9 + $0x10] sm:$0xff]
    %v524 = vld [vmem:[#allocation9 + $0x18] sm:$0xff]
    %v525 = vsel %vm102, %v515, 0
    %527 = vmatprep.subr.mxu0 0.0
    %528 = vmatpush1.msra.mxu0 %v521
    %529 = vmatprep.subr.mxu0 0.0
    %530 = vmatpush1.msra.mxu0 %v522
    %531 = vmatprep.subr.mxu0 0.0
    %532 = vmatpush1.msra.mxu0 %v523
    %533 = vmatprep.subr.mxu0 0.0
    %534 = vmatpush1.msra.mxu0 %v524
    %535 = vmatprep.subr.mxu0 0.0
    %536 = vmatpush1.msra.mxu0 0.0
    %537 = vmatprep.subr.mxu0 0.0
    %538 = vmatpush1.msra.mxu0 0.0
    %539 = vmatprep.subr.mxu0 0.0
    %540 = vmatpush1.msra.mxu0 0.0
    %541 = vmatprep.subr.mxu0 0.0
    %542 = vmatpush1.msra.mxu0 0.0
    %543 = vmatprep.subr.mxu0 0.0
    %544 = vmatpush1.msra.mxu0 0.0
    %545 = vmatprep.subr.mxu0 0.0
    %546 = vmatpush1.msra.mxu0 0.0
    %547 = vmatprep.subr.mxu0 0.0
    %548 = vmatpush1.msra.mxu0 0.0
    %549 = vmatprep.subr.mxu0 0.0
    %550 = vmatpush1.msra.mxu0 0.0
    %551 = vmatprep.subr.mxu0 0.0
    %552 = vmatpush1.msra.mxu0 0.0
    %553 = vmatprep.subr.mxu0 0.0
    %554 = vmatpush1.msra.mxu0 0.0
    %555 = vmatprep.subr.mxu0 0.0
    %556 = vmatpush1.msra.mxu0 0.0
    %557 = vmatprep.subr.mxu0 0.0
    %558 = vmatpush1.msra.mxu0 0.0
    %559 = vmatprep.subr.mxu0 0.0
    %560 = vmatpush1.msra.mxu0 0.0
    %561 = vmatprep.subr.mxu0 0.0
    %562 = vmatpush1.msra.mxu0 0.0
    %563 = vmatprep.subr.mxu0 0.0
    %564 = vmatpush1.msra.mxu0 0.0
    %565 = vmatprep.subr.mxu0 0.0
    %566 = vmatpush1.msra.mxu0 0.0
    %567 = vmatprep.subr.mxu0 0.0
    %568 = vmatpush1.msra.mxu0 0.0
    %569 = vmatprep.subr.mxu0 0.0
    %570 = vmatpush1.msra.mxu0 0.0
    %571 = vmatprep.subr.mxu0 0.0
    %572 = vmatpush1.msra.mxu0 0.0
    %573 = vmatprep.subr.mxu0 0.0
    %574 = vmatpush1.msra.mxu0 0.0
    %575 = vmatprep.subr.mxu0 0.0
    %576 = vmatpush1.msra.mxu0 0.0
    %577 = vmatprep.subr.mxu0 0.0
    %578 = vmatpush1.msra.mxu0 0.0
    %579 = vmatprep.subr.mxu0 0.0
    %580 = vmatpush1.msra.mxu0 0.0
    %581 = vmatprep.subr.mxu0 0.0
    %582 = vmatpush1.msra.mxu0 0.0
    %583 = vmatprep.subr.mxu0 0.0
    %584 = vmatpush1.msra.mxu0 0.0
    %585 = vmatprep.subr.mxu0 0.0
    %586 = vmatpush1.msra.mxu0 0.0
    %587 = vmatprep.subr.mxu0 0.0
    %588 = vmatpush1.msra.mxu0 0.0
    %589 = vmatprep.subr.mxu0 0.0
    %590 = vmatpush1.msra.mxu0 0.0
    %591 = vmatprep.mubr.f32.mxu0 0.0
    %592 = vmatmul.mubr.f32.gmra.mrb[0].mxu0 %v525
    %v593 = vpop.f32.mrb[0].mxu0
    %v594 = vadd.f32 0.0, %v593
    %v595 = vpop.f32.mrb[0].mxu0
    %596 = vdwg.mxu0
    %v597 = vadd.f32 %v520, %v594
    %v598 = vxor.u32 %v597, 2147483648
    %v599 = vmul.f32 %v598, 1.442695
    %v600 = vpow.pop %v599
    %v601 = vadd.f32 %v600, 1.0
    %v602 = vrcp.pop %v601
    %v603 = vmul.f32 1.0, %v602
    %v604 = vtanh.pop %v597
    %v605 = vmul.f32 %v603, %v506
    %607 = vrot.lane.b32.xlu0 %v604, 64
    %v608 = vpop.permute.xlu0 %607
    %v610 = vmul.f32 %v603, %v608
    %612 = vrot.lane.b32.xlu0 %v610, 32
    %v613 = vpop.permute.xlu0 %612
    %v615 = vadd.f32 %v605, %v613
    %v616 = vtanh.pop %v615
    %618 = vrot.lane.b32.xlu0 %v616, 64
    %v619 = vpop.permute.xlu0 %618
    %v621 = vmul.f32 %v603, %v619
    %623 = vrot.lane.b32.xlu0 %v621, 32
    %v624 = vpop.permute.xlu0 %623
    %s626 = scalar_lea.vmem [#allocation3], 6
    %627 = vst.msk [vmem:[%s626] sm:$0x3] %vm299, %v624
    %s628 = scalar_lea.vmem [#allocation2], 8
    %v629 = vld [vmem:[%s628] sm:$0x3]
    %v630 = vld [vmem:[#allocation9] sm:$0xff]
    %v631 = vld [vmem:[#allocation9 + $0x8] sm:$0xff]
    %v632 = vld [vmem:[#allocation9 + $0x10] sm:$0xff]
    %v633 = vld [vmem:[#allocation9 + $0x18] sm:$0xff]
    %v634 = vsel %vm102, %v624, 0
    %636 = vmatprep.subr.mxu0 0.0
    %637 = vmatpush1.msra.mxu0 %v630
    %638 = vmatprep.subr.mxu0 0.0
    %639 = vmatpush1.msra.mxu0 %v631
    %640 = vmatprep.subr.mxu0 0.0
    %641 = vmatpush1.msra.mxu0 %v632
    %642 = vmatprep.subr.mxu0 0.0
    %643 = vmatpush1.msra.mxu0 %v633
    %644 = vmatprep.subr.mxu0 0.0
    %645 = vmatpush1.msra.mxu0 0.0
    %646 = vmatprep.subr.mxu0 0.0
    %647 = vmatpush1.msra.mxu0 0.0
    %648 = vmatprep.subr.mxu0 0.0
    %649 = vmatpush1.msra.mxu0 0.0
    %650 = vmatprep.subr.mxu0 0.0
    %651 = vmatpush1.msra.mxu0 0.0
    %652 = vmatprep.subr.mxu0 0.0
    %653 = vmatpush1.msra.mxu0 0.0
    %654 = vmatprep.subr.mxu0 0.0
    %655 = vmatpush1.msra.mxu0 0.0
    %656 = vmatprep.subr.mxu0 0.0
    %657 = vmatpush1.msra.mxu0 0.0
    %658 = vmatprep.subr.mxu0 0.0
    %659 = vmatpush1.msra.mxu0 0.0
    %660 = vmatprep.subr.mxu0 0.0
    %661 = vmatpush1.msra.mxu0 0.0
    %662 = vmatprep.subr.mxu0 0.0
    %663 = vmatpush1.msra.mxu0 0.0
    %664 = vmatprep.subr.mxu0 0.0
    %665 = vmatpush1.msra.mxu0 0.0
    %666 = vmatprep.subr.mxu0 0.0
    %667 = vmatpush1.msra.mxu0 0.0
    %668 = vmatprep.subr.mxu0 0.0
    %669 = vmatpush1.msra.mxu0 0.0
    %670 = vmatprep.subr.mxu0 0.0
    %671 = vmatpush1.msra.mxu0 0.0
    %672 = vmatprep.subr.mxu0 0.0
    %673 = vmatpush1.msra.mxu0 0.0
    %674 = vmatprep.subr.mxu0 0.0
    %675 = vmatpush1.msra.mxu0 0.0
    %676 = vmatprep.subr.mxu0 0.0
    %677 = vmatpush1.msra.mxu0 0.0
    %678 = vmatprep.subr.mxu0 0.0
    %679 = vmatpush1.msra.mxu0 0.0
    %680 = vmatprep.subr.mxu0 0.0
    %681 = vmatpush1.msra.mxu0 0.0
    %682 = vmatprep.subr.mxu0 0.0
    %683 = vmatpush1.msra.mxu0 0.0
    %684 = vmatprep.subr.mxu0 0.0
    %685 = vmatpush1.msra.mxu0 0.0
    %686 = vmatprep.subr.mxu0 0.0
    %687 = vmatpush1.msra.mxu0 0.0
    %688 = vmatprep.subr.mxu0 0.0
    %689 = vmatpush1.msra.mxu0 0.0
    %690 = vmatprep.subr.mxu0 0.0
    %691 = vmatpush1.msra.mxu0 0.0
    %692 = vmatprep.subr.mxu0 0.0
    %693 = vmatpush1.msra.mxu0 0.0
    %694 = vmatprep.subr.mxu0 0.0
    %695 = vmatpush1.msra.mxu0 0.0
    %696 = vmatprep.subr.mxu0 0.0
    %697 = vmatpush1.msra.mxu0 0.0
    %698 = vmatprep.subr.mxu0 0.0
    %699 = vmatpush1.msra.mxu0 0.0
    %700 = vmatprep.mubr.f32.mxu0 0.0
    %701 = vmatmul.mubr.f32.gmra.mrb[0].mxu0 %v634
    %v702 = vpop.f32.mrb[0].mxu0
    %v703 = vadd.f32 0.0, %v702
    %v704 = vpop.f32.mrb[0].mxu0
    %705 = vdwg.mxu0
    %v706 = vadd.f32 %v629, %v703
    %v707 = vxor.u32 %v706, 2147483648
    %v708 = vmul.f32 %v707, 1.442695
    %v709 = vpow.pop %v708
    %v710 = vadd.f32 %v709, 1.0
    %v711 = vrcp.pop %v710
    %v712 = vmul.f32 1.0, %v711
    %v713 = vtanh.pop %v706
    %v714 = vmul.f32 %v712, %v615
    %716 = vrot.lane.b32.xlu0 %v713, 64
    %v717 = vpop.permute.xlu0 %716
    %v719 = vmul.f32 %v712, %v717
    %721 = vrot.lane.b32.xlu0 %v719, 32
    %v722 = vpop.permute.xlu0 %721
    %v724 = vadd.f32 %v714, %v722
    %v725 = vtanh.pop %v724
    %727 = vrot.lane.b32.xlu0 %v725, 64
    %v728 = vpop.permute.xlu0 %727
    %v730 = vmul.f32 %v712, %v728
    %732 = vrot.lane.b32.xlu0 %v730, 32
    %v733 = vpop.permute.xlu0 %732
    %s735 = scalar_lea.vmem [#allocation3], 8
    %736 = vst.msk [vmem:[%s735] sm:$0x3] %vm299, %v733
    %s737 = scalar_lea.vmem [#allocation2], 10
    %v738 = vld [vmem:[%s737] sm:$0x3]
    %v739 = vld [vmem:[#allocation9] sm:$0xff]
    %v740 = vld [vmem:[#allocation9 + $0x8] sm:$0xff]
    %v741 = vld [vmem:[#allocation9 + $0x10] sm:$0xff]
    %v742 = vld [vmem:[#allocation9 + $0x18] sm:$0xff]
    %v743 = vsel %vm102, %v733, 0
    %745 = vmatprep.subr.mxu0 0.0
    %746 = vmatpush1.msra.mxu0 %v739
    %747 = vmatprep.subr.mxu0 0.0
    %748 = vmatpush1.msra.mxu0 %v740
    %749 = vmatprep.subr.mxu0 0.0
    %750 = vmatpush1.msra.mxu0 %v741
    %751 = vmatprep.subr.mxu0 0.0
    %752 = vmatpush1.msra.mxu0 %v742
    %753 = vmatprep.subr.mxu0 0.0
    %754 = vmatpush1.msra.mxu0 0.0
    %755 = vmatprep.subr.mxu0 0.0
    %756 = vmatpush1.msra.mxu0 0.0
    %757 = vmatprep.subr.mxu0 0.0
    %758 = vmatpush1.msra.mxu0 0.0
    %759 = vmatprep.subr.mxu0 0.0
    %760 = vmatpush1.msra.mxu0 0.0
    %761 = vmatprep.subr.mxu0 0.0
    %762 = vmatpush1.msra.mxu0 0.0
    %763 = vmatprep.subr.mxu0 0.0
    %764 = vmatpush1.msra.mxu0 0.0
    %765 = vmatprep.subr.mxu0 0.0
    %766 = vmatpush1.msra.mxu0 0.0
    %767 = vmatprep.subr.mxu0 0.0
    %768 = vmatpush1.msra.mxu0 0.0
    %769 = vmatprep.subr.mxu0 0.0
    %770 = vmatpush1.msra.mxu0 0.0
    %771 = vmatprep.subr.mxu0 0.0
    %772 = vmatpush1.msra.mxu0 0.0
    %773 = vmatprep.subr.mxu0 0.0
    %774 = vmatpush1.msra.mxu0 0.0
    %775 = vmatprep.subr.mxu0 0.0
    %776 = vmatpush1.msra.mxu0 0.0
    %777 = vmatprep.subr.mxu0 0.0
    %778 = vmatpush1.msra.mxu0 0.0
    %779 = vmatprep.subr.mxu0 0.0
    %780 = vmatpush1.msra.mxu0 0.0
    %781 = vmatprep.subr.mxu0 0.0
    %782 = vmatpush1.msra.mxu0 0.0
    %783 = vmatprep.subr.mxu0 0.0
    %784 = vmatpush1.msra.mxu0 0.0
    %785 = vmatprep.subr.mxu0 0.0
    %786 = vmatpush1.msra.mxu0 0.0
    %787 = vmatprep.subr.mxu0 0.0
    %788 = vmatpush1.msra.mxu0 0.0
    %789 = vmatprep.subr.mxu0 0.0
    %790 = vmatpush1.msra.mxu0 0.0
    %791 = vmatprep.subr.mxu0 0.0
    %792 = vmatpush1.msra.mxu0 0.0
    %793 = vmatprep.subr.mxu0 0.0
    %794 = vmatpush1.msra.mxu0 0.0
    %795 = vmatprep.subr.mxu0 0.0
    %796 = vmatpush1.msra.mxu0 0.0
    %797 = vmatprep.subr.mxu0 0.0
    %798 = vmatpush1.msra.mxu0 0.0
    %799 = vmatprep.subr.mxu0 0.0
    %800 = vmatpush1.msra.mxu0 0.0
    %801 = vmatprep.subr.mxu0 0.0
    %802 = vmatpush1.msra.mxu0 0.0
    %803 = vmatprep.subr.mxu0 0.0
    %804 = vmatpush1.msra.mxu0 0.0
    %805 = vmatprep.subr.mxu0 0.0
    %806 = vmatpush1.msra.mxu0 0.0
    %807 = vmatprep.subr.mxu0 0.0
    %808 = vmatpush1.msra.mxu0 0.0
    %809 = vmatprep.mubr.f32.mxu0 0.0
    %810 = vmatmul.mubr.f32.gmra.mrb[0].mxu0 %v743
    %v811 = vpop.f32.mrb[0].mxu0
    %v812 = vadd.f32 0.0, %v811
    %v813 = vpop.f32.mrb[0].mxu0
    %814 = vdwg.mxu0
    %v815 = vadd.f32 %v738, %v812
    %v816 = vxor.u32 %v815, 2147483648
    %v817 = vmul.f32 %v816, 1.442695
    %v818 = vpow.pop %v817
    %v819 = vadd.f32 %v818, 1.0
    %v820 = vrcp.pop %v819
    %v821 = vmul.f32 1.0, %v820
    %v822 = vtanh.pop %v815
    %v823 = vmul.f32 %v821, %v724
    %825 = vrot.lane.b32.xlu0 %v822, 64
    %v826 = vpop.permute.xlu0 %825
    %v828 = vmul.f32 %v821, %v826
    %830 = vrot.lane.b32.xlu0 %v828, 32
    %v831 = vpop.permute.xlu0 %830
    %v833 = vadd.f32 %v823, %v831
    %v834 = vtanh.pop %v833
    %836 = vrot.lane.b32.xlu0 %v834, 64
    %v837 = vpop.permute.xlu0 %836
    %v839 = vmul.f32 %v821, %v837
    %841 = vrot.lane.b32.xlu0 %v839, 32
    %v842 = vpop.permute.xlu0 %841
    %s844 = scalar_lea.vmem [#allocation3], 10
    %845 = vst.msk [vmem:[%s844] sm:$0x3] %vm299, %v842
    %s846 = scalar_lea.vmem [#allocation2], 12
    %v847 = vld [vmem:[%s846] sm:$0x3]
    %v848 = vld [vmem:[#allocation9] sm:$0xff]
    %v849 = vld [vmem:[#allocation9 + $0x8] sm:$0xff]
    %v850 = vld [vmem:[#allocation9 + $0x10] sm:$0xff]
    %v851 = vld [vmem:[#allocation9 + $0x18] sm:$0xff]
    %v852 = vsel %vm102, %v842, 0
    %854 = vmatprep.subr.mxu0 0.0
    %855 = vmatpush1.msra.mxu0 %v848
    %856 = vmatprep.subr.mxu0 0.0
    %857 = vmatpush1.msra.mxu0 %v849
    %858 = vmatprep.subr.mxu0 0.0
    %859 = vmatpush1.msra.mxu0 %v850
    %860 = vmatprep.subr.mxu0 0.0
    %861 = vmatpush1.msra.mxu0 %v851
    %862 = vmatprep.subr.mxu0 0.0
    %863 = vmatpush1.msra.mxu0 0.0
    %864 = vmatprep.subr.mxu0 0.0
    %865 = vmatpush1.msra.mxu0 0.0
    %866 = vmatprep.subr.mxu0 0.0
    %867 = vmatpush1.msra.mxu0 0.0
    %868 = vmatprep.subr.mxu0 0.0
    %869 = vmatpush1.msra.mxu0 0.0
    %870 = vmatprep.subr.mxu0 0.0
    %871 = vmatpush1.msra.mxu0 0.0
    %872 = vmatprep.subr.mxu0 0.0
    %873 = vmatpush1.msra.mxu0 0.0
    %874 = vmatprep.subr.mxu0 0.0
    %875 = vmatpush1.msra.mxu0 0.0
    %876 = vmatprep.subr.mxu0 0.0
    %877 = vmatpush1.msra.mxu0 0.0
    %878 = vmatprep.subr.mxu0 0.0
    %879 = vmatpush1.msra.mxu0 0.0
    %880 = vmatprep.subr.mxu0 0.0
    %881 = vmatpush1.msra.mxu0 0.0
    %882 = vmatprep.subr.mxu0 0.0
    %883 = vmatpush1.msra.mxu0 0.0
    %884 = vmatprep.subr.mxu0 0.0
    %885 = vmatpush1.msra.mxu0 0.0
    %886 = vmatprep.subr.mxu0 0.0
    %887 = vmatpush1.msra.mxu0 0.0
    %888 = vmatprep.subr.mxu0 0.0
    %889 = vmatpush1.msra.mxu0 0.0
    %890 = vmatprep.subr.mxu0 0.0
    %891 = vmatpush1.msra.mxu0 0.0
    %892 = vmatprep.subr.mxu0 0.0
    %893 = vmatpush1.msra.mxu0 0.0
    %894 = vmatprep.subr.mxu0 0.0
    %895 = vmatpush1.msra.mxu0 0.0
    %896 = vmatprep.subr.mxu0 0.0
    %897 = vmatpush1.msra.mxu0 0.0
    %898 = vmatprep.subr.mxu0 0.0
    %899 = vmatpush1.msra.mxu0 0.0
    %900 = vmatprep.subr.mxu0 0.0
    %901 = vmatpush1.msra.mxu0 0.0
    %902 = vmatprep.subr.mxu0 0.0
    %903 = vmatpush1.msra.mxu0 0.0
    %904 = vmatprep.subr.mxu0 0.0
    %905 = vmatpush1.msra.mxu0 0.0
    %906 = vmatprep.subr.mxu0 0.0
    %907 = vmatpush1.msra.mxu0 0.0
    %908 = vmatprep.subr.mxu0 0.0
    %909 = vmatpush1.msra.mxu0 0.0
    %910 = vmatprep.subr.mxu0 0.0
    %911 = vmatpush1.msra.mxu0 0.0
    %912 = vmatprep.subr.mxu0 0.0
    %913 = vmatpush1.msra.mxu0 0.0
    %914 = vmatprep.subr.mxu0 0.0
    %915 = vmatpush1.msra.mxu0 0.0
    %916 = vmatprep.subr.mxu0 0.0
    %917 = vmatpush1.msra.mxu0 0.0
    %918 = vmatprep.mubr.f32.mxu0 0.0
    %919 = vmatmul.mubr.f32.gmra.mrb[0].mxu0 %v852
    %v920 = vpop.f32.mrb[0].mxu0
    %v921 = vadd.f32 0.0, %v920
    %v922 = vpop.f32.mrb[0].mxu0
    %923 = vdwg.mxu0
    %v924 = vadd.f32 %v847, %v921
    %v925 = vxor.u32 %v924, 2147483648
    %v926 = vmul.f32 %v925, 1.442695
    %v927 = vpow.pop %v926
    %v928 = vadd.f32 %v927, 1.0
    %v929 = vrcp.pop %v928
    %v930 = vmul.f32 1.0, %v929
    %v931 = vtanh.pop %v924
    %v932 = vmul.f32 %v930, %v833
    %934 = vrot.lane.b32.xlu0 %v931, 64
    %v935 = vpop.permute.xlu0 %934
    %v937 = vmul.f32 %v930, %v935
    %939 = vrot.lane.b32.xlu0 %v937, 32
    %v940 = vpop.permute.xlu0 %939
    %v942 = vadd.f32 %v932, %v940
    %v943 = vtanh.pop %v942
    %945 = vrot.lane.b32.xlu0 %v943, 64
    %v946 = vpop.permute.xlu0 %945
    %v948 = vmul.f32 %v930, %v946
    %950 = vrot.lane.b32.xlu0 %v948, 32
    %v951 = vpop.permute.xlu0 %950
    %s953 = scalar_lea.vmem [#allocation3], 12
    %954 = vst.msk [vmem:[%s953] sm:$0x3] %vm299, %v951
    %s955 = scalar_lea.vmem [#allocation2], 14
    %v956 = vld [vmem:[%s955] sm:$0x3]
    %v957 = vld [vmem:[#allocation9] sm:$0xff]
    %v958 = vld [vmem:[#allocation9 + $0x8] sm:$0xff]
    %v959 = vld [vmem:[#allocation9 + $0x10] sm:$0xff]
    %v960 = vld [vmem:[#allocation9 + $0x18] sm:$0xff]
    %v961 = vsel %vm102, %v951, 0
    %963 = vmatprep.subr.mxu0 0.0
    %964 = vmatpush1.msra.mxu0 %v957
    %965 = vmatprep.subr.mxu0 0.0
    %966 = vmatpush1.msra.mxu0 %v958
    %967 = vmatprep.subr.mxu0 0.0
    %968 = vmatpush1.msra.mxu0 %v959
    %969 = vmatprep.subr.mxu0 0.0
    %970 = vmatpush1.msra.mxu0 %v960
    %971 = vmatprep.subr.mxu0 0.0
    %972 = vmatpush1.msra.mxu0 0.0
    %973 = vmatprep.subr.mxu0 0.0
    %974 = vmatpush1.msra.mxu0 0.0
    %975 = vmatprep.subr.mxu0 0.0
    %976 = vmatpush1.msra.mxu0 0.0
    %977 = vmatprep.subr.mxu0 0.0
    %978 = vmatpush1.msra.mxu0 0.0
    %979 = vmatprep.subr.mxu0 0.0
    %980 = vmatpush1.msra.mxu0 0.0
    %981 = vmatprep.subr.mxu0 0.0
    %982 = vmatpush1.msra.mxu0 0.0
    %983 = vmatprep.subr.mxu0 0.0
    %984 = vmatpush1.msra.mxu0 0.0
    %985 = vmatprep.subr.mxu0 0.0
    %986 = vmatpush1.msra.mxu0 0.0
    %987 = vmatprep.subr.mxu0 0.0
    %988 = vmatpush1.msra.mxu0 0.0
    %989 = vmatprep.subr.mxu0 0.0
    %990 = vmatpush1.msra.mxu0 0.0
    %991 = vmatprep.subr.mxu0 0.0
    %992 = vmatpush1.msra.mxu0 0.0
    %993 = vmatprep.subr.mxu0 0.0
    %994 = vmatpush1.msra.mxu0 0.0
    %995 = vmatprep.subr.mxu0 0.0
    %996 = vmatpush1.msra.mxu0 0.0
    %997 = vmatprep.subr.mxu0 0.0
    %998 = vmatpush1.msra.mxu0 0.0
    %999 = vmatprep.subr.mxu0 0.0
    %1000 = vmatpush1.msra.mxu0 0.0
    %1001 = vmatprep.subr.mxu0 0.0
    %1002 = vmatpush1.msra.mxu0 0.0
    %1003 = vmatprep.subr.mxu0 0.0
    %1004 = vmatpush1.msra.mxu0 0.0
    %1005 = vmatprep.subr.mxu0 0.0
    %1006 = vmatpush1.msra.mxu0 0.0
    %1007 = vmatprep.subr.mxu0 0.0
    %1008 = vmatpush1.msra.mxu0 0.0
    %1009 = vmatprep.subr.mxu0 0.0
    %1010 = vmatpush1.msra.mxu0 0.0
    %1011 = vmatprep.subr.mxu0 0.0
    %1012 = vmatpush1.msra.mxu0 0.0
    %1013 = vmatprep.subr.mxu0 0.0
    %1014 = vmatpush1.msra.mxu0 0.0
    %1015 = vmatprep.subr.mxu0 0.0
    %1016 = vmatpush1.msra.mxu0 0.0
    %1017 = vmatprep.subr.mxu0 0.0
    %1018 = vmatpush1.msra.mxu0 0.0
    %1019 = vmatprep.subr.mxu0 0.0
    %1020 = vmatpush1.msra.mxu0 0.0
    %1021 = vmatprep.subr.mxu0 0.0
    %1022 = vmatpush1.msra.mxu0 0.0
    %1023 = vmatprep.subr.mxu0 0.0
    %1024 = vmatpush1.msra.mxu0 0.0
    %1025 = vmatprep.subr.mxu0 0.0
    %1026 = vmatpush1.msra.mxu0 0.0
    %1027 = vmatprep.mubr.f32.mxu0 0.0
    %1028 = vmatmul.mubr.f32.gmra.mrb[0].mxu0 %v961
    %v1029 = vpop.f32.mrb[0].mxu0
    %v1030 = vadd.f32 0.0, %v1029
    %v1031 = vpop.f32.mrb[0].mxu0
    %1032 = vdwg.mxu0
    %v1033 = vadd.f32 %v956, %v1030
    %v1034 = vxor.u32 %v1033, 2147483648
    %v1035 = vmul.f32 %v1034, 1.442695
    %v1036 = vpow.pop %v1035
    %v1037 = vadd.f32 %v1036, 1.0
    %v1038 = vrcp.pop %v1037
    %v1039 = vmul.f32 1.0, %v1038
    %v1040 = vtanh.pop %v1033
    %v1041 = vmul.f32 %v1039, %v942
    %1043 = vrot.lane.b32.xlu0 %v1040, 64
    %v1044 = vpop.permute.xlu0 %1043
    %v1046 = vmul.f32 %v1039, %v1044
    %1048 = vrot.lane.b32.xlu0 %v1046, 32
    %v1049 = vpop.permute.xlu0 %1048
    %v1051 = vadd.f32 %v1041, %v1049
    %v1052 = vtanh.pop %v1051
    %1054 = vrot.lane.b32.xlu0 %v1052, 64
    %v1055 = vpop.permute.xlu0 %1054
    %v1057 = vmul.f32 %v1039, %v1055
    %1059 = vrot.lane.b32.xlu0 %v1057, 32
    %v1060 = vpop.permute.xlu0 %1059
    %s1062 = scalar_lea.vmem [#allocation3], 14
    %1063 = vst.msk [vmem:[%s1062] sm:$0x3] %vm299, %v1060
    %1064 = vst.msk [vmem:[#allocation13] sm:$0x3] %vm299, %v1060
    %1066 = vrot.lane.b32.xlu0 %v1051, 96
    %v1067 = vpop.permute.xlu0 %1066
    %1069 = vst.msk [vmem:[#allocation15] sm:$0x3] %vm299, %v1067
    %v1070 = vld [vmem:[#allocation3] ss:$2 sm:$0xff]
    %v1071 = vld [vmem:[#allocation10] sm:$0xff]
    %v1072 = vld [vmem:[#allocation10 + $0x8] sm:$0xff]
    %v1073 = vld [vmem:[#allocation10 + $0x10] sm:$0xff]
    %v1074 = vld [vmem:[#allocation10 + $0x18] sm:$0xff]
    %v1075 = vld [vmem:[%s7] sm:$0x1]
    %v1077 = vlaneseq
    %v1078 = vshrl.u32 %v1077, 7
    %v1079 = vsub.s32 0, %v1078
    %v1080 = vrot.slane %v1075, %v1079
    %v1083 = vsel %vm102, %v1070, 0
    %1085 = vmatprep.subr.mxu0 0.0
    %1086 = vmatpush1.msra.mxu0 %v1071
    %1087 = vmatprep.subr.mxu0 0.0
    %1088 = vmatpush1.msra.mxu0 %v1072
    %1089 = vmatprep.subr.mxu0 0.0
    %1090 = vmatpush1.msra.mxu0 %v1073
    %1091 = vmatprep.subr.mxu0 0.0
    %1092 = vmatpush1.msra.mxu0 %v1074
    %1093 = vmatprep.subr.mxu0 0.0
    %1094 = vmatpush1.msra.mxu0 0.0
    %1095 = vmatprep.subr.mxu0 0.0
    %1096 = vmatpush1.msra.mxu0 0.0
    %1097 = vmatprep.subr.mxu0 0.0
    %1098 = vmatpush1.msra.mxu0 0.0
    %1099 = vmatprep.subr.mxu0 0.0
    %1100 = vmatpush1.msra.mxu0 0.0
    %1101 = vmatprep.subr.mxu0 0.0
    %1102 = vmatpush1.msra.mxu0 0.0
    %1103 = vmatprep.subr.mxu0 0.0
    %1104 = vmatpush1.msra.mxu0 0.0
    %1105 = vmatprep.subr.mxu0 0.0
    %1106 = vmatpush1.msra.mxu0 0.0
    %1107 = vmatprep.subr.mxu0 0.0
    %1108 = vmatpush1.msra.mxu0 0.0
    %1109 = vmatprep.subr.mxu0 0.0
    %1110 = vmatpush1.msra.mxu0 0.0
    %1111 = vmatprep.subr.mxu0 0.0
    %1112 = vmatpush1.msra.mxu0 0.0
    %1113 = vmatprep.subr.mxu0 0.0
    %1114 = vmatpush1.msra.mxu0 0.0
    %1115 = vmatprep.subr.mxu0 0.0
    %1116 = vmatpush1.msra.mxu0 0.0
    %1117 = vmatprep.subr.mxu0 0.0
    %1118 = vmatpush1.msra.mxu0 0.0
    %1119 = vmatprep.subr.mxu0 0.0
    %1120 = vmatpush1.msra.mxu0 0.0
    %1121 = vmatprep.subr.mxu0 0.0
    %1122 = vmatpush1.msra.mxu0 0.0
    %1123 = vmatprep.subr.mxu0 0.0
    %1124 = vmatpush1.msra.mxu0 0.0
    %1125 = vmatprep.subr.mxu0 0.0
    %1126 = vmatpush1.msra.mxu0 0.0
    %1127 = vmatprep.subr.mxu0 0.0
    %1128 = vmatpush1.msra.mxu0 0.0
    %1129 = vmatprep.subr.mxu0 0.0
    %1130 = vmatpush1.msra.mxu0 0.0
    %1131 = vmatprep.subr.mxu0 0.0
    %1132 = vmatpush1.msra.mxu0 0.0
    %1133 = vmatprep.subr.mxu0 0.0
    %1134 = vmatpush1.msra.mxu0 0.0
    %1135 = vmatprep.subr.mxu0 0.0
    %1136 = vmatpush1.msra.mxu0 0.0
    %1137 = vmatprep.subr.mxu0 0.0
    %1138 = vmatpush1.msra.mxu0 0.0
    %1139 = vmatprep.subr.mxu0 0.0
    %1140 = vmatpush1.msra.mxu0 0.0
    %1141 = vmatprep.subr.mxu0 0.0
    %1142 = vmatpush1.msra.mxu0 0.0
    %1143 = vmatprep.subr.mxu0 0.0
    %1144 = vmatpush1.msra.mxu0 0.0
    %1145 = vmatprep.subr.mxu0 0.0
    %1146 = vmatpush1.msra.mxu0 0.0
    %1147 = vmatprep.subr.mxu0 0.0
    %1148 = vmatpush1.msra.mxu0 0.0
    %1149 = vmatprep.mubr.f32.mxu0 0.0
    %1150 = vmatmul.mubr.f32.gmra.mrb[0].mxu0 %v1083
    %v1151 = vpop.f32.mrb[0].mxu0
    %v1152 = vadd.f32 %v1080, %v1151
    %v1153 = vpop.f32.mrb[0].mxu0
    %1154 = vdwg.mxu0
    %1155 = vmax.xlane.f32.xlu0 %v1152
    %v1156 = vpop.xlane.xlu0 %1155
    %v1157 = vsub.f32 %v1152, %v1156
    %v1158 = vmul.f32 %v1157, 1.442695
    %v1159 = vpow.pop %v1158
    %1160 = vadd.xlane.f32.xlu0 %v1159
    %v1161 = vpop.xlane.xlu0 %1160
    %v1162 = vlog2.pop %v1161
    %v1163 = vmul.f32 %v1162, 0.6931472
    %v1164 = vadd.f32 %v1163, %v1156
    %v1165 = vsub.f32 %v1152, %v1164
    %1166 = vst [vmem:[#allocation12] sm:$0xff] %v1165
    %s1167 = scalar_lea.vmem [#allocation3], 1
    %v1168 = vld [vmem:[%s1167] ss:$2 sm:$0xff]
    %v1169 = vld [vmem:[#allocation10] sm:$0xff]
    %v1170 = vld [vmem:[#allocation10 + $0x8] sm:$0xff]
    %v1171 = vld [vmem:[#allocation10 + $0x10] sm:$0xff]
    %v1172 = vld [vmem:[#allocation10 + $0x18] sm:$0xff]
    %v1173 = vld [vmem:[%s7] sm:$0x1]
    %v1175 = vlaneseq
    %v1176 = vshrl.u32 %v1175, 7
    %v1177 = vsub.s32 0, %v1176
    %v1178 = vrot.slane %v1173, %v1177
    %v1181 = vsel %vm102, %v1168, 0
    %1183 = vmatprep.subr.mxu0 0.0
    %1184 = vmatpush1.msra.mxu0 %v1169
    %1185 = vmatprep.subr.mxu0 0.0
    %1186 = vmatpush1.msra.mxu0 %v1170
    %1187 = vmatprep.subr.mxu0 0.0
    %1188 = vmatpush1.msra.mxu0 %v1171
    %1189 = vmatprep.subr.mxu0 0.0
    %1190 = vmatpush1.msra.mxu0 %v1172
    %1191 = vmatprep.subr.mxu0 0.0
    %1192 = vmatpush1.msra.mxu0 0.0
    %1193 = vmatprep.subr.mxu0 0.0
    %1194 = vmatpush1.msra.mxu0 0.0
    %1195 = vmatprep.subr.mxu0 0.0
    %1196 = vmatpush1.msra.mxu0 0.0
    %1197 = vmatprep.subr.mxu0 0.0
    %1198 = vmatpush1.msra.mxu0 0.0
    %1199 = vmatprep.subr.mxu0 0.0
    %1200 = vmatpush1.msra.mxu0 0.0
    %1201 = vmatprep.subr.mxu0 0.0
    %1202 = vmatpush1.msra.mxu0 0.0
    %1203 = vmatprep.subr.mxu0 0.0
    %1204 = vmatpush1.msra.mxu0 0.0
    %1205 = vmatprep.subr.mxu0 0.0
    %1206 = vmatpush1.msra.mxu0 0.0
    %1207 = vmatprep.subr.mxu0 0.0
    %1208 = vmatpush1.msra.mxu0 0.0
    %1209 = vmatprep.subr.mxu0 0.0
    %1210 = vmatpush1.msra.mxu0 0.0
    %1211 = vmatprep.subr.mxu0 0.0
    %1212 = vmatpush1.msra.mxu0 0.0
    %1213 = vmatprep.subr.mxu0 0.0
    %1214 = vmatpush1.msra.mxu0 0.0
    %1215 = vmatprep.subr.mxu0 0.0
    %1216 = vmatpush1.msra.mxu0 0.0
    %1217 = vmatprep.subr.mxu0 0.0
    %1218 = vmatpush1.msra.mxu0 0.0
    %1219 = vmatprep.subr.mxu0 0.0
    %1220 = vmatpush1.msra.mxu0 0.0
    %1221 = vmatprep.subr.mxu0 0.0
    %1222 = vmatpush1.msra.mxu0 0.0
    %1223 = vmatprep.subr.mxu0 0.0
    %1224 = vmatpush1.msra.mxu0 0.0
    %1225 = vmatprep.subr.mxu0 0.0
    %1226 = vmatpush1.msra.mxu0 0.0
    %1227 = vmatprep.subr.mxu0 0.0
    %1228 = vmatpush1.msra.mxu0 0.0
    %1229 = vmatprep.subr.mxu0 0.0
    %1230 = vmatpush1.msra.mxu0 0.0
    %1231 = vmatprep.subr.mxu0 0.0
    %1232 = vmatpush1.msra.mxu0 0.0
    %1233 = vmatprep.subr.mxu0 0.0
    %1234 = vmatpush1.msra.mxu0 0.0
    %1235 = vmatprep.subr.mxu0 0.0
    %1236 = vmatpush1.msra.mxu0 0.0
    %1237 = vmatprep.subr.mxu0 0.0
    %1238 = vmatpush1.msra.mxu0 0.0
    %1239 = vmatprep.subr.mxu0 0.0
    %1240 = vmatpush1.msra.mxu0 0.0
    %1241 = vmatprep.subr.mxu0 0.0
    %1242 = vmatpush1.msra.mxu0 0.0
    %1243 = vmatprep.subr.mxu0 0.0
    %1244 = vmatpush1.msra.mxu0 0.0
    %1245 = vmatprep.subr.mxu0 0.0
    %1246 = vmatpush1.msra.mxu0 0.0
    %1247 = vmatprep.mubr.f32.mxu0 0.0
    %1248 = vmatmul.mubr.f32.gmra.mrb[0].mxu0 %v1181
    %v1249 = vpop.f32.mrb[0].mxu0
    %v1250 = vadd.f32 %v1178, %v1249
    %v1251 = vpop.f32.mrb[0].mxu0
    %1252 = vdwg.mxu0
    %1253 = vmax.xlane.f32.xlu0 %v1250
    %v1254 = vpop.xlane.xlu0 %1253
    %v1255 = vsub.f32 %v1250, %v1254
    %v1256 = vmul.f32 %v1255, 1.442695
    %v1257 = vpow.pop %v1256
    %1258 = vadd.xlane.f32.xlu0 %v1257
    %v1259 = vpop.xlane.xlu0 %1258
    %v1260 = vlog2.pop %v1259
    %v1261 = vmul.f32 %v1260, 0.6931472
    %v1262 = vadd.f32 %v1261, %v1254
    %v1263 = vsub.f32 %v1250, %v1262
    %s1264 = scalar_lea.vmem [#allocation12], 8
    %1265 = vst [vmem:[%s1264] sm:$0xff] %v1263
    // Predicated region
    $region50: #{tpu_custom_call.1} parent=1 // pred_check
      _
    $region51: #{tpu_custom_call.1} parent=1 // pred_check_branch
      %1267 = sbr.rel (0) target = $region53
    $region52: #{tpu_custom_call.1} parent=1 // pred_region
      %s1269 = ssub.s32 256, 256
      %1270 = vsyncadd [#allocation6], %s1269
      %s1271 = sshll.u32 [#allocation12], 4
      %s1272 = int_to_ptr.vmem [resolvable:$true] %s1271
      %1277 = dma.vmem_to_hbm [thread:$0]  %s1272, 256, %s8, [#allocation6], 128, 128, 8
    $region53: #{tpu_custom_call.1} parent=1 // pred_fallthru
      _
    // Predicated region
    $region54: #{tpu_custom_call.1} parent=1 // pred_check
      _
    $region55: #{tpu_custom_call.1} parent=1 // pred_check_branch
      %1279 = sbr.rel (0) target = $region57
    $region56: #{tpu_custom_call.1} parent=1 // pred_region
      %s1281 = ssub.s32 32, 32
      %1282 = vsyncadd [#allocation14], %s1281
      %s1284 = sshll.u32 [#allocation13], 4
      %s1285 = int_to_ptr.vmem [resolvable:$true] %s1284
      %1287 = dma.vmem_to_hbm [thread:$0]  %s1285, 32, %s9, [#allocation14]
    $region57: #{tpu_custom_call.1} parent=1 // pred_fallthru
      _
    // Predicated region
    $region58: #{tpu_custom_call.1} parent=1 // pred_check
      _
    $region59: #{tpu_custom_call.1} parent=1 // pred_check_branch
      %1289 = sbr.rel (0) target = $region61
    $region60: #{tpu_custom_call.1} parent=1 // pred_region
      %s1291 = ssub.s32 32, 32
      %1292 = vsyncadd [#allocation14], %s1291
      %s1294 = sshll.u32 [#allocation15], 4
      %s1295 = int_to_ptr.vmem [resolvable:$true] %s1294
      %1297 = dma.vmem_to_hbm [thread:$0]  %s1295, 32, %s10, [#allocation14]
    $region61: #{tpu_custom_call.1} parent=1 // pred_fallthru
      _
    // Predicated region
    $region62: #{tpu_custom_call.1} parent=1 // pred_check
      _
    $region63: #{tpu_custom_call.1} parent=1 // pred_check_branch
      %1299 = sbr.rel (0) target = $region65
    $region64: #{tpu_custom_call.1} parent=1 // pred_region
      %1300 = dma.done [#allocation6], 256
    $region65: #{tpu_custom_call.1} parent=1 // pred_fallthru
      _
    // Predicated region
    $region66: #{tpu_custom_call.1} parent=1 // pred_check
      _
    $region67: #{tpu_custom_call.1} parent=1 // pred_check_branch
      %1302 = sbr.rel (0) target = $region69
    $region68: #{tpu_custom_call.1} parent=1 // pred_region
      %1303 = dma.done [#allocation14], 32
    $region69: #{tpu_custom_call.1} parent=1 // pred_fallthru
      _
    // Predicated region
    $region70: #{tpu_custom_call.1} parent=1 // pred_check
      _
    $region71: #{tpu_custom_call.1} parent=1 // pred_check_branch
      %1305 = sbr.rel (0) target = $region73
    $region72: #{tpu_custom_call.1} parent=1 // pred_region
      %1306 = dma.done [#allocation14], 32
    $region73: #{tpu_custom_call.1} parent=1 // pred_fallthru
      _
    %1307 = vsyncpa [#allocation5], 1
    %1308 = vsyncpa [#allocation8], 1
    %1309 = vsyncpa [#allocation11], 1
    %1310 = vsyncpa [#allocation6], 1
    %1311 = vsyncpa [#allocation14], 1

</llo_original>
